<compile_context>
chip_gen: v7x
topology: tpu7x:2x2x1
jax: 0.10.0
libtpu: 0.0.40
codegen_flags: <defaults>
</compile_context>

<pallas_src>
import jax
import jax.numpy as jnp
from jax.experimental import pallas as pl
from jax.experimental.pallas import tpu as pltpu

# ---- model hyper-parameters (small, consistent with the module's transformer) ----
DIM = 32           # dim
DEPTH = 2          # depth
HEADS = 4          # heads
DIM_HEAD = 8       # dim_head
MLP_DIM = 64       # mlp_dim
INNER = HEADS * DIM_HEAD     # 32 (project_out=True since heads != 1)
EPS = 1e-5         # nn.LayerNorm default eps
SCALE = DIM_HEAD ** (-0.5)

B = 2              # batch
N = 8              # sequence length
LOG2_N = 3
assert (1 << LOG2_N) == N

# ---- packed parameter slab layout (lane width = 128; everything lane-0 aligned) ----
LANES = 128
HEADER_ROWS = 8
H_LNK_W, H_LNK_B, H_LNV_W, H_LNV_B = 0, 1, 2, 3

# per-layer vector rows (relative to layer base), each at lane 0
V_LN1W, V_LN1B = 0, 1
V_LN2W, V_LN2B = 2, 3
V_LN3W, V_LN3B = 4, 5
V_CBO, V_SBO = 6, 7
V_FFB1, V_FFB2 = 8, 9
# per-layer matrices (8-row aligned, all starting at lane 0)
M_CQKV = 16        # (DIM, 3*INNER)   cols [0:96)   = [cwq | cwk | cwv]
M_CWO = 48         # (INNER, DIM)     cols [0:32)
M_SQKV = 80        # (DIM, 3*INNER)   cols [0:96)   = [swq | swk | swv]
M_SWO = 112        # (INNER, DIM)     cols [0:32)
M_FFW1 = 144       # (DIM, MLP_DIM)   cols [0:64)
M_FFW2 = 176       # (MLP_DIM, DIM)   cols [0:32)
LAYER_ROWS = 240
TOTAL_ROWS = HEADER_ROWS + DEPTH * LAYER_ROWS   # 488


# ------------------------- in-kernel math helpers -------------------------

def _layernorm(x, w, b):
    # One fused pass: E[x], E[x^2]; biased variance, eps=1e-5 (PyTorch LayerNorm).
    mu = jnp.mean(x, axis=-1, keepdims=True)
    m2 = jnp.mean(x * x, axis=-1, keepdims=True)
    return (x - mu) * jax.lax.rsqrt(m2 - mu * mu + EPS) * w + b


def _erf(x):
    # Abramowitz & Stegun 7.1.26 rational approximation (|err| < 1.5e-7), so the
    # erf-based (exact) nn.GELU() semantics are preserved in float32.
    p = 0.3275911
    a1, a2, a3, a4, a5 = 0.254829592, -0.284496736, 1.421413741, -1.453152027, 1.061405429
    ax = jnp.abs(x)
    t = 1.0 / (1.0 + p * ax)
    poly = ((((a5 * t + a4) * t + a3) * t + a2) * t + a1) * t
    y = 1.0 - poly * jnp.exp(-ax * ax)
    return jnp.where(x >= 0.0, y, -y)


def _gelu_exact(x):
    return 0.5 * x * (1.0 + _erf(x * 0.7071067811865476))


# ------------------------------ fused Pallas kernel ------------------------------

def make_transformer_kernel(nb):
    """Build the kernel body for `nb` batch elements per grid step."""
    rows = nb * N                 # activation rows handled per step
    gn = nb * HEADS * N           # (head, batch, seq) rows for block-diag attention

    def to_heads(p, r0, c0):
        # rows [r0:r0+rows), lanes [c0:c0+INNER) of p  ->  (gn, DIM_HEAD),
        # row order (h, b, n): 4 lane-slices + 1 sublane concat (no per-(b,h) loop).
        return jnp.concatenate(
            [p[r0:r0 + rows, c0 + h * DIM_HEAD:c0 + (h + 1) * DIM_HEAD]
             for h in range(HEADS)], axis=0)

    def from_heads(o):
        # (gn, DIM_HEAD) row order (h, b, n)  ->  (rows, INNER)
        return jnp.concatenate(
            [o[h * rows:(h + 1) * rows, :] for h in range(HEADS)], axis=1)

    def mha(qh, kh, vh, wo, bo, mask):
        # Block-diagonal attention: ONE (gn,Dh)@(Dh,gn) scores matmul + mask,
        # softmax, ONE (gn,gn)@(gn,Dh) matmul, then merge + output projection.
        s = jax.lax.dot_general(qh, kh, (((1,), (1,)), ((), ())),
                                preferred_element_type=jnp.float32) * SCALE + mask
        s = s - jnp.max(s, axis=-1, keepdims=True)          # stable softmax
        e = jnp.exp(s)
        a = e * pl.reciprocal(jnp.sum(e, axis=-1, keepdims=True), approx=True)
        o = jnp.dot(a, vh, preferred_element_type=jnp.float32)          # (gn, Dh)
        return jnp.dot(from_heads(o), wo, preferred_element_type=jnp.float32) + bo

    def kernel(q_ref, k_ref, v_ref, w_ref, o_ref):
        # Constant block-diagonal mask over (head, batch) groups of N rows (hoisted).
        ri = jax.lax.broadcasted_iota(jnp.int32, (gn, gn), 0)
        ci = jax.lax.broadcasted_iota(jnp.int32, (gn, gn), 1)
        mask = jnp.where((ri >> LOG2_N) == (ci >> LOG2_N), 0.0, -1e30
                         ).astype(jnp.float32)

        # Top-level lnk / lnv (the reference computes lnk(q) too but never uses it).
        k = _layernorm(k_ref[...], w_ref[H_LNK_W:H_LNK_W + 1, 0:DIM],
                       w_ref[H_LNK_B:H_LNK_B + 1, 0:DIM])
        v = _layernorm(v_ref[...], w_ref[H_LNV_W:H_LNV_W + 1, 0:DIM],
                       w_ref[H_LNV_B:H_LNV_B + 1, 0:DIM])
        q = q_ref[...]                                                   # (rows, DIM)

        x = q
        for L in range(DEPTH):                                           # unrolled depth loop
            base = HEADER_ROWS + L * LAYER_ROWS

            c_wqkv = w_ref[base + M_CQKV:base + M_CQKV + DIM, 0:3 * INNER]
            c_wo = w_ref[base + M_CWO:base + M_CWO + INNER, 0:DIM]
            s_wqkv = w_ref[base + M_SQKV:base + M_SQKV + DIM, 0:3 * INNER]
            s_wo = w_ref[base + M_SWO:base + M_SWO + INNER, 0:DIM]
            ffw1 = w_ref[base + M_FFW1:base + M_FFW1 + DIM, 0:MLP_DIM]
            ffw2 = w_ref[base + M_FFW2:base + M_FFW2 + MLP_DIM, 0:DIM]

            def vec(r, width=DIM, _base=base):
                return w_ref[_base + r:_base + r + 1, 0:width]

            ln1_w, ln1_b = vec(V_LN1W), vec(V_LN1B)
            ln2_w, ln2_b = vec(V_LN2W), vec(V_LN2B)
            ln3_w, ln3_b = vec(V_LN3W), vec(V_LN3B)
            cbo, sbo = vec(V_CBO), vec(V_SBO)
            ffb1, ffb2 = vec(V_FFB1, MLP_DIM), vec(V_FFB2)

            # q = ln1(q)  (this normalized q is what the next layer consumes as q)
            q = _layernorm(q, ln1_w, ln1_b)

            # ---- cross attention: single fused [q;k;v] @ [wq|wk|wv] matmul ----
            pc = jnp.dot(jnp.concatenate([q, k, v], axis=0), c_wqkv,
                         preferred_element_type=jnp.float32)            # (3*rows, 96)
            x = mha(to_heads(pc, 0, 0),
                    to_heads(pc, rows, INNER),
                    to_heads(pc, 2 * rows, 2 * INNER),
                    c_wo, cbo, mask) + q

            x = _layernorm(x, ln2_w, ln2_b)

            # ---- self attention: single fused QKV matmul ----
            ps = jnp.dot(x, s_wqkv, preferred_element_type=jnp.float32)  # (rows, 96)
            x = mha(to_heads(ps, 0, 0),
                    to_heads(ps, 0, INNER),
                    to_heads(ps, 0, 2 * INNER),
                    s_wo, sbo, mask) + x

            # ---- PreNorm feed-forward (exact GELU) ----
            xn = _layernorm(x, ln3_w, ln3_b)
            h = _gelu_exact(jnp.dot(xn, ffw1, preferred_element_type=jnp.float32) + ffb1)
            x = jnp.dot(h, ffw2, preferred_element_type=jnp.float32) + ffb2 + x

        o_ref[...] = x

    return kernel


# ------------------------------ pallas_call glue ------------------------------

def _multi_tensorcore_chip():
    # v7x has 2 TensorCores per chip -> shard the batch across them.
    try:
        kind = jax.devices()[0].device_kind.lower()
    except Exception:
        return False
    return ("v7" in kind) or ("7x" in kind)


def custom_transformer_forward(w_slab, q, k, v):
    bb, n, d = q.shape
    assert n == N and d == DIM

    # On multi-TC chips split the grid over batch (fully independent work);
    # on single-TC v5e/v6e keep one grid step (no per-step overhead).
    nb = 1 if (_multi_tensorcore_chip() and bb > 1) else bb
    steps = bb // nb
    rows = nb * N
    kernel = make_transformer_kernel(nb)

    q2 = q.reshape(bb * n, d)
    k2 = k.reshape(bb * n, d)
    v2 = v.reshape(bb * n, d)

    out = pl.pallas_call(
        kernel,
        out_shape=jax.ShapeDtypeStruct((bb * n, d), jnp.float32),
        grid_spec=pltpu.PrefetchScalarGridSpec(
            num_scalar_prefetch=0,
            grid=(steps,),
            in_specs=[pl.BlockSpec((rows, d), lambda i: (i, 0)),
                      pl.BlockSpec((rows, d), lambda i: (i, 0)),
                      pl.BlockSpec((rows, d), lambda i: (i, 0)),
                      pl.BlockSpec((TOTAL_ROWS, LANES), lambda i: (0, 0))],
            out_specs=pl.BlockSpec((rows, d), lambda i: (i, 0))),
        compiler_params=pltpu.CompilerParams(
            dimension_semantics=(("parallel",) if steps > 1 else ("arbitrary",))),
    )(q2, k2, v2, w_slab)
    return out.reshape(bb, n, d)


# ------------------------------ parameter init & packing ------------------------------

def init_params(key):
    def nrm(kk, shape, scale=0.05):
        return scale * jax.random.normal(kk, shape, jnp.float32)

    keys = iter(jax.random.split(key, 16 * DEPTH + 4))
    params = {
        "lnk_w": jnp.ones((DIM,), jnp.float32),
        "lnk_b": jnp.zeros((DIM,), jnp.float32),
        "lnv_w": jnp.ones((DIM,), jnp.float32),
        "lnv_b": jnp.zeros((DIM,), jnp.float32),
        "layers": [],
    }
    for _ in range(DEPTH):
        layer = {
            "ln1_w": jnp.ones((DIM,), jnp.float32),
            "ln1_b": jnp.zeros((DIM,), jnp.float32),
            # cross-attention (to_q/to_k/to_v no bias; to_out has bias)
            "cwq": nrm(next(keys), (DIM, INNER)),
            "cwk": nrm(next(keys), (DIM, INNER)),
            "cwv": nrm(next(keys), (DIM, INNER)),
            "cwo": nrm(next(keys), (INNER, DIM)),
            "cbo": nrm(next(keys), (DIM,), 0.01),
            "ln2_w": jnp.ones((DIM,), jnp.float32),
            "ln2_b": jnp.zeros((DIM,), jnp.float32),
            # self-attention
            "swq": nrm(next(keys), (DIM, INNER)),
            "swk": nrm(next(keys), (DIM, INNER)),
            "swv": nrm(next(keys), (DIM, INNER)),
            "swo": nrm(next(keys), (INNER, DIM)),
            "sbo": nrm(next(keys), (DIM,), 0.01),
            # PreNorm + FeedForward
            "ln3_w": jnp.ones((DIM,), jnp.float32),
            "ln3_b": jnp.zeros((DIM,), jnp.float32),
            "ffw1": nrm(next(keys), (DIM, MLP_DIM)),
            "ffb1": nrm(next(keys), (MLP_DIM,), 0.01),
            "ffw2": nrm(next(keys), (MLP_DIM, DIM)),
            "ffb2": nrm(next(keys), (DIM,), 0.01),
        }
        params["layers"].append(layer)
    return params


def pack_params(params):
    # Pack everything into one contiguous (TOTAL_ROWS, 128) f32 slab (single DMA);
    # every matrix / vector starts at lane 0 on its own row group.
    slab = jnp.zeros((TOTAL_ROWS, LANES), jnp.float32)
    slab = slab.at[H_LNK_W, 0:DIM].set(params["lnk_w"])
    slab = slab.at[H_LNK_B, 0:DIM].set(params["lnk_b"])
    slab = slab.at[H_LNV_W, 0:DIM].set(params["lnv_w"])
    slab = slab.at[H_LNV_B, 0:DIM].set(params["lnv_b"])
    for L, lp in enumerate(params["layers"]):
        b0 = HEADER_ROWS + L * LAYER_ROWS
        slab = slab.at[b0 + V_LN1W, 0:DIM].set(lp["ln1_w"])
        slab = slab.at[b0 + V_LN1B, 0:DIM].set(lp["ln1_b"])
        slab = slab.at[b0 + V_LN2W, 0:DIM].set(lp["ln2_w"])
        slab = slab.at[b0 + V_LN2B, 0:DIM].set(lp["ln2_b"])
        slab = slab.at[b0 + V_LN3W, 0:DIM].set(lp["ln3_w"])
        slab = slab.at[b0 + V_LN3B, 0:DIM].set(lp["ln3_b"])
        slab = slab.at[b0 + V_CBO, 0:DIM].set(lp["cbo"])
        slab = slab.at[b0 + V_SBO, 0:DIM].set(lp["sbo"])
        slab = slab.at[b0 + V_FFB1, 0:MLP_DIM].set(lp["ffb1"])
        slab = slab.at[b0 + V_FFB2, 0:DIM].set(lp["ffb2"])
        slab = slab.at[b0 + M_CQKV:b0 + M_CQKV + DIM, 0:3 * INNER].set(
            jnp.concatenate([lp["cwq"], lp["cwk"], lp["cwv"]], axis=1))
        slab = slab.at[b0 + M_CWO:b0 + M_CWO + INNER, 0:DIM].set(lp["cwo"])
        slab = slab.at[b0 + M_SQKV:b0 + M_SQKV + DIM, 0:3 * INNER].set(
            jnp.concatenate([lp["swq"], lp["swk"], lp["swv"]], axis=1))
        slab = slab.at[b0 + M_SWO:b0 + M_SWO + INNER, 0:DIM].set(lp["swo"])
        slab = slab.at[b0 + M_FFW1:b0 + M_FFW1 + DIM, 0:MLP_DIM].set(lp["ffw1"])
        slab = slab.at[b0 + M_FFW2:b0 + M_FFW2 + MLP_DIM, 0:DIM].set(lp["ffw2"])
    return slab


# ------------------------------ pure-JAX reference ------------------------------

def reference_forward(params, q, k, v):
    hp = jax.lax.Precision.HIGHEST

    def ln(x, w, b):
        mu = jnp.mean(x, axis=-1, keepdims=True)
        var = jnp.mean((x - mu) ** 2, axis=-1, keepdims=True)
        return (x - mu) * jax.lax.rsqrt(var + EPS) * w + b

    def attn(xq, xk, xv, wq, wk, wv, wo, bo):
        qp = jnp.einsum('bnd,de->bne', xq, wq, precision=hp)
        kp = jnp.einsum('bnd,de->bne', xk, wk, precision=hp)
        vp = jnp.einsum('bnd,de->bne', xv, wv, precision=hp)

        def split(t):
            return t.reshape(t.shape[0], t.shape[1], HEADS, DIM_HEAD).transpose(0, 2, 1, 3)

        qh, kh, vh = split(qp), split(kp), split(vp)
        s = jnp.einsum('bhqd,bhkd->bhqk', qh, kh, precision=hp) * SCALE
        a = jax.nn.softmax(s, axis=-1)
        o = jnp.einsum('bhqk,bhkd->bhqd', a, vh, precision=hp)
        o = o.transpose(0, 2, 1, 3).reshape(xq.shape[0], xq.shape[1], INNER)
        return jnp.einsum('bne,ed->bnd', o, wo, precision=hp) + bo

    k = ln(k, params["lnk_w"], params["lnk_b"])
    v = ln(v, params["lnv_w"], params["lnv_b"])
    x = q
    for lp in params["layers"]:
        q = ln(q, lp["ln1_w"], lp["ln1_b"])
        x = attn(q, k, v, lp["cwq"], lp["cwk"], lp["cwv"], lp["cwo"], lp["cbo"]) + q
        x = ln(x, lp["ln2_w"], lp["ln2_b"])
        x = attn(x, x, x, lp["swq"], lp["swk"], lp["swv"], lp["swo"], lp["sbo"]) + x
        xn = ln(x, lp["ln3_w"], lp["ln3_b"])
        h = jax.nn.gelu(jnp.einsum('bnd,dm->bnm', xn, lp["ffw1"], precision=hp) + lp["ffb1"],
                        approximate=False)
        x = jnp.einsum('bnm,md->bnd', h, lp["ffw2"], precision=hp) + lp["ffb2"] + x
    return x


# ----------------------------------- main -----------------------------------

if __name__ == "__main__":
    root = jax.random.PRNGKey(0)
    kp, kq, kk, kv = jax.random.split(root, 4)
    params = init_params(kp)
    w_slab = pack_params(params)

    q = jax.random.normal(kq, (B, N, DIM), jnp.float32)
    k = jax.random.normal(kk, (B, N, DIM), jnp.float32)
    v = jax.random.normal(kv, (B, N, DIM), jnp.float32)

    out = custom_transformer_forward(w_slab, q, k, v)
    jax.block_until_ready(out)

    assert out.shape == (B, N, DIM) and out.dtype == jnp.float32
    ref = reference_forward(params, q, k, v)
    assert jnp.allclose(out, ref, atol=2e-3, rtol=2e-3), \
        f"max abs diff {float(jnp.max(jnp.abs(out - ref)))}"
    print("KERNEL_OK")
</pallas_src>

<mosaic_0001>
module attributes {stable_mosaic.version = 11 : i64} {
  func.func @kernel(%arg0: i32, %arg1: memref<16x32xf32, #tpu.memory_space<vmem>>, %arg2: memref<16x32xf32, #tpu.memory_space<vmem>>, %arg3: memref<16x32xf32, #tpu.memory_space<vmem>>, %arg4: memref<488x128xf32, #tpu.memory_space<vmem>>, %arg5: memref<16x32xf32, #tpu.memory_space<vmem>>) attributes {dimension_semantics = [#tpu.dimension_semantics<arbitrary>], iteration_bounds = array<i64: 1>, scalar_prefetch = 0 : i64, scratch_operands = 0 : i64, tpu.core_type = #tpu.core_type<tc>, window_params = [{transform_indices = @transform_0, window_bounds = array<i64: 16, 32>}, {transform_indices = @transform_1, window_bounds = array<i64: 16, 32>}, {transform_indices = @transform_2, window_bounds = array<i64: 16, 32>}, {pipeline_mode = #tpu.pipeline_mode<synchronous>, transform_indices = @transform_3, window_bounds = array<i64: 488, 128>}, {transform_indices = @transform_4, window_bounds = array<i64: 16, 32>}]} {
    %0 = tpu.iota {dimensions = array<i32: 0>} : vector<64x64xi32>
    %1 = tpu.iota {dimensions = array<i32: 1>} : vector<64x64xi32>
    %c3_i32 = arith.constant 3 : i32
    %2 = vector.broadcast %c3_i32 : i32 to vector<64x64xi32>
    %3 = arith.shrsi %0, %2 : vector<64x64xi32>
    %c3_i32_0 = arith.constant 3 : i32
    %4 = vector.broadcast %c3_i32_0 : i32 to vector<64x64xi32>
    %5 = arith.shrsi %1, %4 : vector<64x64xi32>
    %6 = arith.cmpi eq, %3, %5 : vector<64x64xi32>
    %cst = arith.constant 0.000000e+00 : f32
    %cst_1 = arith.constant -1.000000e+30 : f32
    %7 = vector.broadcast %cst : f32 to vector<64x64xf32>
    %8 = vector.broadcast %cst_1 : f32 to vector<64x64xf32>
    %9 = arith.select %6, %7, %8 : vector<64x64xi1>, vector<64x64xf32>
    %c0 = arith.constant 0 : index
    %c0_2 = arith.constant 0 : index
    %10 = vector.load %arg2[%c0, %c0_2] : memref<16x32xf32, #tpu.memory_space<vmem>>, vector<16x32xf32>
    %c0_3 = arith.constant 0 : index
    %c0_4 = arith.constant 0 : index
    %11 = vector.load %arg4[%c0_3, %c0_4] : memref<488x128xf32, #tpu.memory_space<vmem>>, vector<1x32xf32>
    %c1 = arith.constant 1 : index
    %c0_5 = arith.constant 0 : index
    %12 = vector.load %arg4[%c1, %c0_5] : memref<488x128xf32, #tpu.memory_space<vmem>>, vector<1x32xf32>
    %cst_6 = arith.constant dense<0.000000e+00> : vector<16xf32>
    %13 = vector.multi_reduction <add>, %10, %cst_6 [1] : vector<16x32xf32> to vector<16xf32>
    %14 = vector.shape_cast %13 : vector<16xf32> to vector<16x1xf32>
    %cst_7 = arith.constant 3.200000e+01 : f32
    %15 = vector.broadcast %cst_7 : f32 to vector<16x1xf32>
    %16 = arith.divf %14, %15 : vector<16x1xf32>
    %17 = arith.mulf %10, %10 : vector<16x32xf32>
    %cst_8 = arith.constant dense<0.000000e+00> : vector<16xf32>
    %18 = vector.multi_reduction <add>, %17, %cst_8 [1] : vector<16x32xf32> to vector<16xf32>
    %19 = vector.shape_cast %18 : vector<16xf32> to vector<16x1xf32>
    %cst_9 = arith.constant 3.200000e+01 : f32
    %20 = vector.broadcast %cst_9 : f32 to vector<16x1xf32>
    %21 = arith.divf %19, %20 : vector<16x1xf32>
    %22 = vector.broadcast %16 : vector<16x1xf32> to vector<16x32xf32>
    %23 = arith.subf %10, %22 : vector<16x32xf32>
    %24 = arith.mulf %16, %16 : vector<16x1xf32>
    %25 = arith.subf %21, %24 : vector<16x1xf32>
    %cst_10 = arith.constant 9.99999974E-6 : f32
    %26 = vector.broadcast %cst_10 : f32 to vector<16x1xf32>
    %27 = arith.addf %25, %26 : vector<16x1xf32>
    %28 = math.rsqrt %27 : vector<16x1xf32>
    %29 = vector.broadcast %28 : vector<16x1xf32> to vector<16x32xf32>
    %30 = arith.mulf %23, %29 : vector<16x32xf32>
    %31 = vector.broadcast %11 : vector<1x32xf32> to vector<16x32xf32>
    %32 = arith.mulf %30, %31 : vector<16x32xf32>
    %33 = vector.broadcast %12 : vector<1x32xf32> to vector<16x32xf32>
    %34 = arith.addf %32, %33 : vector<16x32xf32>
    %c0_11 = arith.constant 0 : index
    %c0_12 = arith.constant 0 : index
    %35 = vector.load %arg3[%c0_11, %c0_12] : memref<16x32xf32, #tpu.memory_space<vmem>>, vector<16x32xf32>
    %c2 = arith.constant 2 : index
    %c0_13 = arith.constant 0 : index
    %36 = vector.load %arg4[%c2, %c0_13] : memref<488x128xf32, #tpu.memory_space<vmem>>, vector<1x32xf32>
    %c3 = arith.constant 3 : index
    %c0_14 = arith.constant 0 : index
    %37 = vector.load %arg4[%c3, %c0_14] : memref<488x128xf32, #tpu.memory_space<vmem>>, vector<1x32xf32>
    %cst_15 = arith.constant dense<0.000000e+00> : vector<16xf32>
    %38 = vector.multi_reduction <add>, %35, %cst_15 [1] : vector<16x32xf32> to vector<16xf32>
    %39 = vector.shape_cast %38 : vector<16xf32> to vector<16x1xf32>
    %cst_16 = arith.constant 3.200000e+01 : f32
    %40 = vector.broadcast %cst_16 : f32 to vector<16x1xf32>
    %41 = arith.divf %39, %40 : vector<16x1xf32>
    %42 = arith.mulf %35, %35 : vector<16x32xf32>
    %cst_17 = arith.constant dense<0.000000e+00> : vector<16xf32>
    %43 = vector.multi_reduction <add>, %42, %cst_17 [1] : vector<16x32xf32> to vector<16xf32>
    %44 = vector.shape_cast %43 : vector<16xf32> to vector<16x1xf32>
    %cst_18 = arith.constant 3.200000e+01 : f32
    %45 = vector.broadcast %cst_18 : f32 to vector<16x1xf32>
    %46 = arith.divf %44, %45 : vector<16x1xf32>
    %47 = vector.broadcast %41 : vector<16x1xf32> to vector<16x32xf32>
    %48 = arith.subf %35, %47 : vector<16x32xf32>
    %49 = arith.mulf %41, %41 : vector<16x1xf32>
    %50 = arith.subf %46, %49 : vector<16x1xf32>
    %cst_19 = arith.constant 9.99999974E-6 : f32
    %51 = vector.broadcast %cst_19 : f32 to vector<16x1xf32>
    %52 = arith.addf %50, %51 : vector<16x1xf32>
    %53 = math.rsqrt %52 : vector<16x1xf32>
    %54 = vector.broadcast %53 : vector<16x1xf32> to vector<16x32xf32>
    %55 = arith.mulf %48, %54 : vector<16x32xf32>
    %56 = vector.broadcast %36 : vector<1x32xf32> to vector<16x32xf32>
    %57 = arith.mulf %55, %56 : vector<16x32xf32>
    %58 = vector.broadcast %37 : vector<1x32xf32> to vector<16x32xf32>
    %59 = arith.addf %57, %58 : vector<16x32xf32>
    %c0_20 = arith.constant 0 : index
    %c0_21 = arith.constant 0 : index
    %60 = vector.load %arg1[%c0_20, %c0_21] : memref<16x32xf32, #tpu.memory_space<vmem>>, vector<16x32xf32>
    %c8 = arith.constant 8 : index
    %c0_22 = arith.constant 0 : index
    %61 = vector.load %arg4[%c8, %c0_22] : memref<488x128xf32, #tpu.memory_space<vmem>>, vector<1x32xf32>
    %c9 = arith.constant 9 : index
    %c0_23 = arith.constant 0 : index
    %62 = vector.load %arg4[%c9, %c0_23] : memref<488x128xf32, #tpu.memory_space<vmem>>, vector<1x32xf32>
    %cst_24 = arith.constant dense<0.000000e+00> : vector<16xf32>
    %63 = vector.multi_reduction <add>, %60, %cst_24 [1] : vector<16x32xf32> to vector<16xf32>
    %64 = vector.shape_cast %63 : vector<16xf32> to vector<16x1xf32>
    %cst_25 = arith.constant 3.200000e+01 : f32
    %65 = vector.broadcast %cst_25 : f32 to vector<16x1xf32>
    %66 = arith.divf %64, %65 : vector<16x1xf32>
    %67 = arith.mulf %60, %60 : vector<16x32xf32>
    %cst_26 = arith.constant dense<0.000000e+00> : vector<16xf32>
    %68 = vector.multi_reduction <add>, %67, %cst_26 [1] : vector<16x32xf32> to vector<16xf32>
    %69 = vector.shape_cast %68 : vector<16xf32> to vector<16x1xf32>
    %cst_27 = arith.constant 3.200000e+01 : f32
    %70 = vector.broadcast %cst_27 : f32 to vector<16x1xf32>
    %71 = arith.divf %69, %70 : vector<16x1xf32>
    %72 = vector.broadcast %66 : vector<16x1xf32> to vector<16x32xf32>
    %73 = arith.subf %60, %72 : vector<16x32xf32>
    %74 = arith.mulf %66, %66 : vector<16x1xf32>
    %75 = arith.subf %71, %74 : vector<16x1xf32>
    %cst_28 = arith.constant 9.99999974E-6 : f32
    %76 = vector.broadcast %cst_28 : f32 to vector<16x1xf32>
    %77 = arith.addf %75, %76 : vector<16x1xf32>
    %78 = math.rsqrt %77 : vector<16x1xf32>
    %79 = vector.broadcast %78 : vector<16x1xf32> to vector<16x32xf32>
    %80 = arith.mulf %73, %79 : vector<16x32xf32>
    %81 = vector.broadcast %61 : vector<1x32xf32> to vector<16x32xf32>
    %82 = arith.mulf %80, %81 : vector<16x32xf32>
    %83 = vector.broadcast %62 : vector<1x32xf32> to vector<16x32xf32>
    %84 = arith.addf %82, %83 : vector<16x32xf32>
    %c264 = arith.constant 264 : index
    %c0_29 = arith.constant 0 : index
    %85 = vector.load %arg4[%c264, %c0_29] : memref<488x128xf32, #tpu.memory_space<vmem>>, vector<32x96xf32>
    %c296 = arith.constant 296 : index
    %c0_30 = arith.constant 0 : index
    %86 = vector.load %arg4[%c296, %c0_30] : memref<488x128xf32, #tpu.memory_space<vmem>>, vector<32x32xf32>
    %c328 = arith.constant 328 : index
    %c0_31 = arith.constant 0 : index
    %87 = vector.load %arg4[%c328, %c0_31] : memref<488x128xf32, #tpu.memory_space<vmem>>, vector<32x96xf32>
    %c360 = arith.constant 360 : index
    %c0_32 = arith.constant 0 : index
    %88 = vector.load %arg4[%c360, %c0_32] : memref<488x128xf32, #tpu.memory_space<vmem>>, vector<32x32xf32>
    %c392 = arith.constant 392 : index
    %c0_33 = arith.constant 0 : index
    %89 = vector.load %arg4[%c392, %c0_33] : memref<488x128xf32, #tpu.memory_space<vmem>>, vector<32x64xf32>
    %c424 = arith.constant 424 : index
    %c0_34 = arith.constant 0 : index
    %90 = vector.load %arg4[%c424, %c0_34] : memref<488x128xf32, #tpu.memory_space<vmem>>, vector<64x32xf32>
    %c248 = arith.constant 248 : index
    %c0_35 = arith.constant 0 : index
    %91 = vector.load %arg4[%c248, %c0_35] : memref<488x128xf32, #tpu.memory_space<vmem>>, vector<1x32xf32>
    %c249 = arith.constant 249 : index
    %c0_36 = arith.constant 0 : index
    %92 = vector.load %arg4[%c249, %c0_36] : memref<488x128xf32, #tpu.memory_space<vmem>>, vector<1x32xf32>
    %c250 = arith.constant 250 : index
    %c0_37 = arith.constant 0 : index
    %93 = vector.load %arg4[%c250, %c0_37] : memref<488x128xf32, #tpu.memory_space<vmem>>, vector<1x32xf32>
    %c251 = arith.constant 251 : index
    %c0_38 = arith.constant 0 : index
    %94 = vector.load %arg4[%c251, %c0_38] : memref<488x128xf32, #tpu.memory_space<vmem>>, vector<1x32xf32>
    %c252 = arith.constant 252 : index
    %c0_39 = arith.constant 0 : index
    %95 = vector.load %arg4[%c252, %c0_39] : memref<488x128xf32, #tpu.memory_space<vmem>>, vector<1x32xf32>
    %c253 = arith.constant 253 : index
    %c0_40 = arith.constant 0 : index
    %96 = vector.load %arg4[%c253, %c0_40] : memref<488x128xf32, #tpu.memory_space<vmem>>, vector<1x32xf32>
    %c254 = arith.constant 254 : index
    %c0_41 = arith.constant 0 : index
    %97 = vector.load %arg4[%c254, %c0_41] : memref<488x128xf32, #tpu.memory_space<vmem>>, vector<1x32xf32>
    %c255 = arith.constant 255 : index
    %c0_42 = arith.constant 0 : index
    %98 = vector.load %arg4[%c255, %c0_42] : memref<488x128xf32, #tpu.memory_space<vmem>>, vector<1x32xf32>
    %c256 = arith.constant 256 : index
    %c0_43 = arith.constant 0 : index
    %99 = vector.load %arg4[%c256, %c0_43] : memref<488x128xf32, #tpu.memory_space<vmem>>, vector<1x64xf32>
    %c257 = arith.constant 257 : index
    %c0_44 = arith.constant 0 : index
    %100 = vector.load %arg4[%c257, %c0_44] : memref<488x128xf32, #tpu.memory_space<vmem>>, vector<1x32xf32>
    %cst_45 = arith.constant dense<0.000000e+00> : vector<16xf32>
    %101 = vector.multi_reduction <add>, %84, %cst_45 [1] : vector<16x32xf32> to vector<16xf32>
    %102 = vector.shape_cast %101 : vector<16xf32> to vector<16x1xf32>
    %cst_46 = arith.constant 3.200000e+01 : f32
    %103 = vector.broadcast %cst_46 : f32 to vector<16x1xf32>
    %104 = arith.divf %102, %103 : vector<16x1xf32>
    %105 = arith.mulf %84, %84 : vector<16x32xf32>
    %cst_47 = arith.constant dense<0.000000e+00> : vector<16xf32>
    %106 = vector.multi_reduction <add>, %105, %cst_47 [1] : vector<16x32xf32> to vector<16xf32>
    %107 = vector.shape_cast %106 : vector<16xf32> to vector<16x1xf32>
    %cst_48 = arith.constant 3.200000e+01 : f32
    %108 = vector.broadcast %cst_48 : f32 to vector<16x1xf32>
    %109 = arith.divf %107, %108 : vector<16x1xf32>
    %110 = vector.broadcast %104 : vector<16x1xf32> to vector<16x32xf32>
    %111 = arith.subf %84, %110 : vector<16x32xf32>
    %112 = arith.mulf %104, %104 : vector<16x1xf32>
    %113 = arith.subf %109, %112 : vector<16x1xf32>
    %cst_49 = arith.constant 9.99999974E-6 : f32
    %114 = vector.broadcast %cst_49 : f32 to vector<16x1xf32>
    %115 = arith.addf %113, %114 : vector<16x1xf32>
    %116 = math.rsqrt %115 : vector<16x1xf32>
    %117 = vector.broadcast %116 : vector<16x1xf32> to vector<16x32xf32>
    %118 = arith.mulf %111, %117 : vector<16x32xf32>
    %119 = vector.broadcast %91 : vector<1x32xf32> to vector<16x32xf32>
    %120 = arith.mulf %118, %119 : vector<16x32xf32>
    %121 = vector.broadcast %92 : vector<1x32xf32> to vector<16x32xf32>
    %122 = arith.addf %120, %121 : vector<16x32xf32>
    %123 = tpu.concatenate %122, %34, %59 in 0 : vector<16x32xf32>, vector<16x32xf32>, vector<16x32xf32> -> vector<48x32xf32>
    %cst_50 = arith.constant dense<0.000000e+00> : vector<48x96xf32>
    %124 = tpu.matmul %123, %85, %cst_50 {dimension_numbers = #tpu.dot_dimension_numbers<[1], [0], [0], [1], [0, 0, 1, 1], [], []>} : vector<48x32xf32>, vector<32x96xf32>, vector<48x96xf32> -> vector<48x96xf32>
    %125 = vector.extract_strided_slice %124 {offsets = [0, 0], sizes = [16, 8], strides = [1, 1]} : vector<48x96xf32> to vector<16x8xf32>
    %126 = vector.extract_strided_slice %124 {offsets = [0, 8], sizes = [16, 8], strides = [1, 1]} : vector<48x96xf32> to vector<16x8xf32>
    %127 = vector.extract_strided_slice %124 {offsets = [0, 16], sizes = [16, 8], strides = [1, 1]} : vector<48x96xf32> to vector<16x8xf32>
    %128 = vector.extract_strided_slice %124 {offsets = [0, 24], sizes = [16, 8], strides = [1, 1]} : vector<48x96xf32> to vector<16x8xf32>
    %129 = tpu.concatenate %125, %126, %127, %128 in 0 : vector<16x8xf32>, vector<16x8xf32>, vector<16x8xf32>, vector<16x8xf32> -> vector<64x8xf32>
    %130 = vector.extract_strided_slice %124 {offsets = [16, 32], sizes = [16, 8], strides = [1, 1]} : vector<48x96xf32> to vector<16x8xf32>
    %131 = vector.extract_strided_slice %124 {offsets = [16, 40], sizes = [16, 8], strides = [1, 1]} : vector<48x96xf32> to vector<16x8xf32>
    %132 = vector.extract_strided_slice %124 {offsets = [16, 48], sizes = [16, 8], strides = [1, 1]} : vector<48x96xf32> to vector<16x8xf32>
    %133 = vector.extract_strided_slice %124 {offsets = [16, 56], sizes = [16, 8], strides = [1, 1]} : vector<48x96xf32> to vector<16x8xf32>
    %134 = tpu.concatenate %130, %131, %132, %133 in 0 : vector<16x8xf32>, vector<16x8xf32>, vector<16x8xf32>, vector<16x8xf32> -> vector<64x8xf32>
    %135 = vector.extract_strided_slice %124 {offsets = [32, 64], sizes = [16, 8], strides = [1, 1]} : vector<48x96xf32> to vector<16x8xf32>
    %136 = vector.extract_strided_slice %124 {offsets = [32, 72], sizes = [16, 8], strides = [1, 1]} : vector<48x96xf32> to vector<16x8xf32>
    %137 = vector.extract_strided_slice %124 {offsets = [32, 80], sizes = [16, 8], strides = [1, 1]} : vector<48x96xf32> to vector<16x8xf32>
    %138 = vector.extract_strided_slice %124 {offsets = [32, 88], sizes = [16, 8], strides = [1, 1]} : vector<48x96xf32> to vector<16x8xf32>
    %139 = tpu.concatenate %135, %136, %137, %138 in 0 : vector<16x8xf32>, vector<16x8xf32>, vector<16x8xf32>, vector<16x8xf32> -> vector<64x8xf32>
    %cst_51 = arith.constant dense<0.000000e+00> : vector<64x64xf32>
    %140 = tpu.matmul %129, %134, %cst_51 {dimension_numbers = #tpu.dot_dimension_numbers<[1], [1], [0], [0], [0, 0, 1, 0], [], []>} : vector<64x8xf32>, vector<64x8xf32>, vector<64x64xf32> -> vector<64x64xf32>
    %cst_52 = arith.constant 0.353553385 : f32
    %141 = vector.broadcast %cst_52 : f32 to vector<64x64xf32>
    %142 = arith.mulf %140, %141 : vector<64x64xf32>
    %143 = arith.addf %142, %9 : vector<64x64xf32>
    %cst_53 = arith.constant dense<0xFF800000> : vector<64xf32>
    %144 = vector.multi_reduction <maximumf>, %143, %cst_53 [1] : vector<64x64xf32> to vector<64xf32>
    %145 = vector.shape_cast %144 : vector<64xf32> to vector<64x1xf32>
    %146 = vector.broadcast %145 : vector<64x1xf32> to vector<64x64xf32>
    %147 = arith.subf %143, %146 : vector<64x64xf32>
    %148 = math.exp %147 : vector<64x64xf32>
    %cst_54 = arith.constant dense<0.000000e+00> : vector<64xf32>
    %149 = vector.multi_reduction <add>, %148, %cst_54 [1] : vector<64x64xf32> to vector<64xf32>
    %150 = vector.shape_cast %149 : vector<64xf32> to vector<64x1xf32>
    %151 = tpu.reciprocal %150 {approx = true} : vector<64x1xf32> -> vector<64x1xf32>
    %152 = vector.broadcast %151 : vector<64x1xf32> to vector<64x64xf32>
    %153 = arith.mulf %148, %152 : vector<64x64xf32>
    %cst_55 = arith.constant dense<0.000000e+00> : vector<64x8xf32>
    %154 = tpu.matmul %153, %139, %cst_55 {dimension_numbers = #tpu.dot_dimension_numbers<[1], [0], [0], [1], [0, 0, 1, 1], [], []>} : vector<64x64xf32>, vector<64x8xf32>, vector<64x8xf32> -> vector<64x8xf32>
    %155 = vector.extract_strided_slice %154 {offsets = [0, 0], sizes = [16, 8], strides = [1, 1]} : vector<64x8xf32> to vector<16x8xf32>
    %156 = vector.extract_strided_slice %154 {offsets = [16, 0], sizes = [16, 8], strides = [1, 1]} : vector<64x8xf32> to vector<16x8xf32>
    %157 = vector.extract_strided_slice %154 {offsets = [32, 0], sizes = [16, 8], strides = [1, 1]} : vector<64x8xf32> to vector<16x8xf32>
    %158 = vector.extract_strided_slice %154 {offsets = [48, 0], sizes = [16, 8], strides = [1, 1]} : vector<64x8xf32> to vector<16x8xf32>
    %159 = tpu.concatenate %155, %156, %157, %158 in 1 : vector<16x8xf32>, vector<16x8xf32>, vector<16x8xf32>, vector<16x8xf32> -> vector<16x32xf32>
    %cst_56 = arith.constant dense<0.000000e+00> : vector<16x32xf32>
    %160 = tpu.matmul %159, %86, %cst_56 {dimension_numbers = #tpu.dot_dimension_numbers<[1], [0], [0], [1], [0, 0, 1, 1], [], []>} : vector<16x32xf32>, vector<32x32xf32>, vector<16x32xf32> -> vector<16x32xf32>
    %161 = vector.broadcast %97 : vector<1x32xf32> to vector<16x32xf32>
    %162 = arith.addf %160, %161 : vector<16x32xf32>
    %163 = arith.addf %162, %122 : vector<16x32xf32>
    %cst_57 = arith.constant dense<0.000000e+00> : vector<16xf32>
    %164 = vector.multi_reduction <add>, %163, %cst_57 [1] : vector<16x32xf32> to vector<16xf32>
    %165 = vector.shape_cast %164 : vector<16xf32> to vector<16x1xf32>
    %cst_58 = arith.constant 3.200000e+01 : f32
    %166 = vector.broadcast %cst_58 : f32 to vector<16x1xf32>
    %167 = arith.divf %165, %166 : vector<16x1xf32>
    %168 = arith.mulf %163, %163 : vector<16x32xf32>
    %cst_59 = arith.constant dense<0.000000e+00> : vector<16xf32>
    %169 = vector.multi_reduction <add>, %168, %cst_59 [1] : vector<16x32xf32> to vector<16xf32>
    %170 = vector.shape_cast %169 : vector<16xf32> to vector<16x1xf32>
    %cst_60 = arith.constant 3.200000e+01 : f32
    %171 = vector.broadcast %cst_60 : f32 to vector<16x1xf32>
    %172 = arith.divf %170, %171 : vector<16x1xf32>
    %173 = vector.broadcast %167 : vector<16x1xf32> to vector<16x32xf32>
    %174 = arith.subf %163, %173 : vector<16x32xf32>
    %175 = arith.mulf %167, %167 : vector<16x1xf32>
    %176 = arith.subf %172, %175 : vector<16x1xf32>
    %cst_61 = arith.constant 9.99999974E-6 : f32
    %177 = vector.broadcast %cst_61 : f32 to vector<16x1xf32>
    %178 = arith.addf %176, %177 : vector<16x1xf32>
    %179 = math.rsqrt %178 : vector<16x1xf32>
    %180 = vector.broadcast %179 : vector<16x1xf32> to vector<16x32xf32>
    %181 = arith.mulf %174, %180 : vector<16x32xf32>
    %182 = vector.broadcast %93 : vector<1x32xf32> to vector<16x32xf32>
    %183 = arith.mulf %181, %182 : vector<16x32xf32>
    %184 = vector.broadcast %94 : vector<1x32xf32> to vector<16x32xf32>
    %185 = arith.addf %183, %184 : vector<16x32xf32>
    %cst_62 = arith.constant dense<0.000000e+00> : vector<16x96xf32>
    %186 = tpu.matmul %185, %87, %cst_62 {dimension_numbers = #tpu.dot_dimension_numbers<[1], [0], [0], [1], [0, 0, 1, 1], [], []>} : vector<16x32xf32>, vector<32x96xf32>, vector<16x96xf32> -> vector<16x96xf32>
    %187 = vector.extract_strided_slice %186 {offsets = [0, 0], sizes = [16, 8], strides = [1, 1]} : vector<16x96xf32> to vector<16x8xf32>
    %188 = vector.extract_strided_slice %186 {offsets = [0, 8], sizes = [16, 8], strides = [1, 1]} : vector<16x96xf32> to vector<16x8xf32>
    %189 = vector.extract_strided_slice %186 {offsets = [0, 16], sizes = [16, 8], strides = [1, 1]} : vector<16x96xf32> to vector<16x8xf32>
    %190 = vector.extract_strided_slice %186 {offsets = [0, 24], sizes = [16, 8], strides = [1, 1]} : vector<16x96xf32> to vector<16x8xf32>
    %191 = tpu.concatenate %187, %188, %189, %190 in 0 : vector<16x8xf32>, vector<16x8xf32>, vector<16x8xf32>, vector<16x8xf32> -> vector<64x8xf32>
    %192 = vector.extract_strided_slice %186 {offsets = [0, 32], sizes = [16, 8], strides = [1, 1]} : vector<16x96xf32> to vector<16x8xf32>
    %193 = vector.extract_strided_slice %186 {offsets = [0, 40], sizes = [16, 8], strides = [1, 1]} : vector<16x96xf32> to vector<16x8xf32>
    %194 = vector.extract_strided_slice %186 {offsets = [0, 48], sizes = [16, 8], strides = [1, 1]} : vector<16x96xf32> to vector<16x8xf32>
    %195 = vector.extract_strided_slice %186 {offsets = [0, 56], sizes = [16, 8], strides = [1, 1]} : vector<16x96xf32> to vector<16x8xf32>
    %196 = tpu.concatenate %192, %193, %194, %195 in 0 : vector<16x8xf32>, vector<16x8xf32>, vector<16x8xf32>, vector<16x8xf32> -> vector<64x8xf32>
    %197 = vector.extract_strided_slice %186 {offsets = [0, 64], sizes = [16, 8], strides = [1, 1]} : vector<16x96xf32> to vector<16x8xf32>
    %198 = vector.extract_strided_slice %186 {offsets = [0, 72], sizes = [16, 8], strides = [1, 1]} : vector<16x96xf32> to vector<16x8xf32>
    %199 = vector.extract_strided_slice %186 {offsets = [0, 80], sizes = [16, 8], strides = [1, 1]} : vector<16x96xf32> to vector<16x8xf32>
    %200 = vector.extract_strided_slice %186 {offsets = [0, 88], sizes = [16, 8], strides = [1, 1]} : vector<16x96xf32> to vector<16x8xf32>
    %201 = tpu.concatenate %197, %198, %199, %200 in 0 : vector<16x8xf32>, vector<16x8xf32>, vector<16x8xf32>, vector<16x8xf32> -> vector<64x8xf32>
    %cst_63 = arith.constant dense<0.000000e+00> : vector<64x64xf32>
    %202 = tpu.matmul %191, %196, %cst_63 {dimension_numbers = #tpu.dot_dimension_numbers<[1], [1], [0], [0], [0, 0, 1, 0], [], []>} : vector<64x8xf32>, vector<64x8xf32>, vector<64x64xf32> -> vector<64x64xf32>
    %cst_64 = arith.constant 0.353553385 : f32
    %203 = vector.broadcast %cst_64 : f32 to vector<64x64xf32>
    %204 = arith.mulf %202, %203 : vector<64x64xf32>
    %205 = arith.addf %204, %9 : vector<64x64xf32>
    %cst_65 = arith.constant dense<0xFF800000> : vector<64xf32>
    %206 = vector.multi_reduction <maximumf>, %205, %cst_65 [1] : vector<64x64xf32> to vector<64xf32>
    %207 = vector.shape_cast %206 : vector<64xf32> to vector<64x1xf32>
    %208 = vector.broadcast %207 : vector<64x1xf32> to vector<64x64xf32>
    %209 = arith.subf %205, %208 : vector<64x64xf32>
    %210 = math.exp %209 : vector<64x64xf32>
    %cst_66 = arith.constant dense<0.000000e+00> : vector<64xf32>
    %211 = vector.multi_reduction <add>, %210, %cst_66 [1] : vector<64x64xf32> to vector<64xf32>
    %212 = vector.shape_cast %211 : vector<64xf32> to vector<64x1xf32>
    %213 = tpu.reciprocal %212 {approx = true} : vector<64x1xf32> -> vector<64x1xf32>
    %214 = vector.broadcast %213 : vector<64x1xf32> to vector<64x64xf32>
    %215 = arith.mulf %210, %214 : vector<64x64xf32>
    %cst_67 = arith.constant dense<0.000000e+00> : vector<64x8xf32>
    %216 = tpu.matmul %215, %201, %cst_67 {dimension_numbers = #tpu.dot_dimension_numbers<[1], [0], [0], [1], [0, 0, 1, 1], [], []>} : vector<64x64xf32>, vector<64x8xf32>, vector<64x8xf32> -> vector<64x8xf32>
    %217 = vector.extract_strided_slice %216 {offsets = [0, 0], sizes = [16, 8], strides = [1, 1]} : vector<64x8xf32> to vector<16x8xf32>
    %218 = vector.extract_strided_slice %216 {offsets = [16, 0], sizes = [16, 8], strides = [1, 1]} : vector<64x8xf32> to vector<16x8xf32>
    %219 = vector.extract_strided_slice %216 {offsets = [32, 0], sizes = [16, 8], strides = [1, 1]} : vector<64x8xf32> to vector<16x8xf32>
    %220 = vector.extract_strided_slice %216 {offsets = [48, 0], sizes = [16, 8], strides = [1, 1]} : vector<64x8xf32> to vector<16x8xf32>
    %221 = tpu.concatenate %217, %218, %219, %220 in 1 : vector<16x8xf32>, vector<16x8xf32>, vector<16x8xf32>, vector<16x8xf32> -> vector<16x32xf32>
    %cst_68 = arith.constant dense<0.000000e+00> : vector<16x32xf32>
    %222 = tpu.matmul %221, %88, %cst_68 {dimension_numbers = #tpu.dot_dimension_numbers<[1], [0], [0], [1], [0, 0, 1, 1], [], []>} : vector<16x32xf32>, vector<32x32xf32>, vector<16x32xf32> -> vector<16x32xf32>
    %223 = vector.broadcast %98 : vector<1x32xf32> to vector<16x32xf32>
    %224 = arith.addf %222, %223 : vector<16x32xf32>
    %225 = arith.addf %224, %185 : vector<16x32xf32>
    %cst_69 = arith.constant dense<0.000000e+00> : vector<16xf32>
    %226 = vector.multi_reduction <add>, %225, %cst_69 [1] : vector<16x32xf32> to vector<16xf32>
    %227 = vector.shape_cast %226 : vector<16xf32> to vector<16x1xf32>
    %cst_70 = arith.constant 3.200000e+01 : f32
    %228 = vector.broadcast %cst_70 : f32 to vector<16x1xf32>
    %229 = arith.divf %227, %228 : vector<16x1xf32>
    %230 = arith.mulf %225, %225 : vector<16x32xf32>
    %cst_71 = arith.constant dense<0.000000e+00> : vector<16xf32>
    %231 = vector.multi_reduction <add>, %230, %cst_71 [1] : vector<16x32xf32> to vector<16xf32>
    %232 = vector.shape_cast %231 : vector<16xf32> to vector<16x1xf32>
    %cst_72 = arith.constant 3.200000e+01 : f32
    %233 = vector.broadcast %cst_72 : f32 to vector<16x1xf32>
    %234 = arith.divf %232, %233 : vector<16x1xf32>
    %235 = vector.broadcast %229 : vector<16x1xf32> to vector<16x32xf32>
    %236 = arith.subf %225, %235 : vector<16x32xf32>
    %237 = arith.mulf %229, %229 : vector<16x1xf32>
    %238 = arith.subf %234, %237 : vector<16x1xf32>
    %cst_73 = arith.constant 9.99999974E-6 : f32
    %239 = vector.broadcast %cst_73 : f32 to vector<16x1xf32>
    %240 = arith.addf %238, %239 : vector<16x1xf32>
    %241 = math.rsqrt %240 : vector<16x1xf32>
    %242 = vector.broadcast %241 : vector<16x1xf32> to vector<16x32xf32>
    %243 = arith.mulf %236, %242 : vector<16x32xf32>
    %244 = vector.broadcast %95 : vector<1x32xf32> to vector<16x32xf32>
    %245 = arith.mulf %243, %244 : vector<16x32xf32>
    %246 = vector.broadcast %96 : vector<1x32xf32> to vector<16x32xf32>
    %247 = arith.addf %245, %246 : vector<16x32xf32>
    %cst_74 = arith.constant dense<0.000000e+00> : vector<16x64xf32>
    %248 = tpu.matmul %247, %89, %cst_74 {dimension_numbers = #tpu.dot_dimension_numbers<[1], [0], [0], [1], [0, 0, 1, 1], [], []>} : vector<16x32xf32>, vector<32x64xf32>, vector<16x64xf32> -> vector<16x64xf32>
    %249 = vector.broadcast %99 : vector<1x64xf32> to vector<16x64xf32>
    %250 = arith.addf %248, %249 : vector<16x64xf32>
    %cst_75 = arith.constant 5.000000e-01 : f32
    %251 = vector.broadcast %cst_75 : f32 to vector<16x64xf32>
    %252 = arith.mulf %251, %250 : vector<16x64xf32>
    %cst_76 = arith.constant 0.707106769 : f32
    %253 = vector.broadcast %cst_76 : f32 to vector<16x64xf32>
    %254 = arith.mulf %250, %253 : vector<16x64xf32>
    %255 = math.absf %254 : vector<16x64xf32>
    %cst_77 = arith.constant 0.327591091 : f32
    %256 = vector.broadcast %cst_77 : f32 to vector<16x64xf32>
    %257 = arith.mulf %256, %255 : vector<16x64xf32>
    %cst_78 = arith.constant 1.000000e+00 : f32
    %258 = vector.broadcast %cst_78 : f32 to vector<16x64xf32>
    %259 = arith.addf %258, %257 : vector<16x64xf32>
    %cst_79 = arith.constant 1.000000e+00 : f32
    %260 = vector.broadcast %cst_79 : f32 to vector<16x64xf32>
    %261 = arith.divf %260, %259 : vector<16x64xf32>
    %cst_80 = arith.constant 1.06140542 : f32
    %262 = vector.broadcast %cst_80 : f32 to vector<16x64xf32>
    %263 = arith.mulf %262, %261 : vector<16x64xf32>
    %cst_81 = arith.constant -1.45315206 : f32
    %264 = vector.broadcast %cst_81 : f32 to vector<16x64xf32>
    %265 = arith.addf %263, %264 : vector<16x64xf32>
    %266 = arith.mulf %265, %261 : vector<16x64xf32>
    %cst_82 = arith.constant 1.42141378 : f32
    %267 = vector.broadcast %cst_82 : f32 to vector<16x64xf32>
    %268 = arith.addf %266, %267 : vector<16x64xf32>
    %269 = arith.mulf %268, %261 : vector<16x64xf32>
    %cst_83 = arith.constant -0.284496725 : f32
    %270 = vector.broadcast %cst_83 : f32 to vector<16x64xf32>
    %271 = arith.addf %269, %270 : vector<16x64xf32>
    %272 = arith.mulf %271, %261 : vector<16x64xf32>
    %cst_84 = arith.constant 0.254829586 : f32
    %273 = vector.broadcast %cst_84 : f32 to vector<16x64xf32>
    %274 = arith.addf %272, %273 : vector<16x64xf32>
    %275 = arith.mulf %274, %261 : vector<16x64xf32>
    %cst_85 = arith.constant 0.000000e+00 : f32
    %276 = vector.broadcast %cst_85 : f32 to vector<16x64xf32>
    %277 = arith.subf %276, %255 : vector<16x64xf32>
    %278 = arith.mulf %277, %255 : vector<16x64xf32>
    %279 = math.exp %278 : vector<16x64xf32>
    %280 = arith.mulf %275, %279 : vector<16x64xf32>
    %cst_86 = arith.constant 1.000000e+00 : f32
    %281 = vector.broadcast %cst_86 : f32 to vector<16x64xf32>
    %282 = arith.subf %281, %280 : vector<16x64xf32>
    %cst_87 = arith.constant 0.000000e+00 : f32
    %283 = vector.broadcast %cst_87 : f32 to vector<16x64xf32>
    %284 = arith.cmpf oge, %254, %283 : vector<16x64xf32>
    %cst_88 = arith.constant 0.000000e+00 : f32
    %285 = vector.broadcast %cst_88 : f32 to vector<16x64xf32>
    %286 = arith.subf %285, %282 : vector<16x64xf32>
    %287 = arith.select %284, %282, %286 : vector<16x64xi1>, vector<16x64xf32>
    %cst_89 = arith.constant 1.000000e+00 : f32
    %288 = vector.broadcast %cst_89 : f32 to vector<16x64xf32>
    %289 = arith.addf %288, %287 : vector<16x64xf32>
    %290 = arith.mulf %252, %289 : vector<16x64xf32>
    %cst_90 = arith.constant dense<0.000000e+00> : vector<16x32xf32>
    %291 = tpu.matmul %290, %90, %cst_90 {dimension_numbers = #tpu.dot_dimension_numbers<[1], [0], [0], [1], [0, 0, 1, 1], [], []>} : vector<16x64xf32>, vector<64x32xf32>, vector<16x32xf32> -> vector<16x32xf32>
    %292 = vector.broadcast %100 : vector<1x32xf32> to vector<16x32xf32>
    %293 = arith.addf %291, %292 : vector<16x32xf32>
    %294 = arith.addf %293, %225 : vector<16x32xf32>
    %c0_91 = arith.constant 0 : index
    %c0_92 = arith.constant 0 : index
    %295 = vector.load %arg5[%c0_91, %c0_92] : memref<16x32xf32, #tpu.memory_space<vmem>>, vector<16x32xf32>
    tpu.vector_store %arg5[%c0_91, %c0_92], %294 {strides = array<i32>} : memref<16x32xf32, #tpu.memory_space<vmem>>, vector<16x32xf32>,
    return
  }
  func.func @transform_0(%arg0: i32) -> (i32, i32) {
    %c0_i32 = arith.constant 0 : i32
    %c0_i32_0 = arith.constant 0 : i32
    return %arg0, %c0_i32 : i32, i32
  }
  func.func @transform_1(%arg0: i32) -> (i32, i32) {
    %c0_i32 = arith.constant 0 : i32
    %c0_i32_0 = arith.constant 0 : i32
    return %arg0, %c0_i32 : i32, i32
  }
  func.func @transform_2(%arg0: i32) -> (i32, i32) {
    %c0_i32 = arith.constant 0 : i32
    %c0_i32_0 = arith.constant 0 : i32
    return %arg0, %c0_i32 : i32, i32
  }
  func.func @transform_3(%arg0: i32) -> (i32, i32) {
    %c0_i32 = arith.constant 0 : i32
    %c0_i32_0 = arith.constant 0 : i32
    %c0_i32_1 = arith.constant 0 : i32
    return %c0_i32, %c0_i32_0 : i32, i32
  }
  func.func @transform_4(%arg0: i32) -> (i32, i32) {
    %c0_i32 = arith.constant 0 : i32
    %c0_i32_0 = arith.constant 0 : i32
    return %arg0, %c0_i32 : i32, i32
  }
}

</mosaic_0001>

<llo_original>
// kernel: tpu_custom_call.1
$region0: #{tpu_custom_call.1}
  #allocation0 [shape = 'u32[]', space=smem, size = 0x4, offset = 0x4, fixed_abs, tag = 'smem constant byte address 0x4 - core index']
  #allocation1 [shape = 'u32[144,128]{1,0:T(1,128)}', space=vmem, size = 0x12000, scoped, tag = 'internal scratch']
  %s0 = inlined_call_operand.hbm [shape: f32[16,32], index: 0, kind: input, shape index: {}]
  %s1 = inlined_call_operand.hbm [shape: f32[16,32], index: 1, kind: input, shape index: {}]
  %s2 = inlined_call_operand.hbm [shape: f32[16,32], index: 2, kind: input, shape index: {}]
  %s3 = inlined_call_operand.hbm [shape: f32[488,128], index: 3, kind: input, shape index: {}]
  %s4 = inlined_call_operand.hbm [shape: f32[16,32], index: 4, kind: output, shape index: {}]
  %s5 = sld [smem:[#allocation0]]
  $region42: #{tpu_custom_call.1} parent=0
    _
  %s7 = ssub.s32 1, %s5
  %s8 = scalar_select 0, %s7, %s5
  $region1: #{tpu_custom_call.1} parent=0
    #allocation2 [shape = 'u8[8192]{0}', space=vmem, size = 0x2000, scoped, tag = 'input window, operand 0, single buffered']
    #allocation3 [shape = 's32[1]{0}', space=sflag, size = 0x4, scoped, tag = 'scoped memory for tpu_custom_call.1']
    #allocation4 [shape = 's32[1]{0}', space=sflag, size = 0x4, scoped, tag = 'scoped memory for tpu_custom_call.1']
    #allocation5 [shape = 'u8[8192]{0}', space=vmem, size = 0x2000, scoped, tag = 'input window, operand 1, single buffered']
    #allocation6 [shape = 's32[1]{0}', space=sflag, size = 0x4, scoped, tag = 'scoped memory for tpu_custom_call.1']
    #allocation7 [shape = 'u8[8192]{0}', space=vmem, size = 0x2000, scoped, tag = 'input window, operand 2, single buffered']
    #allocation8 [shape = 'u8[249856]{0}', space=vmem, size = 0x3d000, scoped, tag = 'input window, operand 3, single buffered']
    #allocation9 [shape = 's32[1]{0}', space=sflag, size = 0x4, scoped, tag = 'scoped memory for tpu_custom_call.1']
    #allocation10 [shape = 'u8[8192]{0}', space=vmem, size = 0x2000, scoped, tag = 'output window, operand 0, single buffered']
    %9 = vsyncpa [#allocation3], 0
    %10 = vsyncpa [#allocation6], 0
    %11 = vsyncpa [#allocation9], 0
    %12 = vsyncpa [#allocation4], 0
    // Predicated region
    $region2: #{tpu_custom_call.1} parent=1 // pred_check
      _
    $region3: #{tpu_custom_call.1} parent=1 // pred_check_branch
      %14 = sbr.rel (0) target = $region5
    $region4: #{tpu_custom_call.1} parent=1 // pred_region
      %s16 = ssub.s32 256, 256
      %17 = vsyncadd [#allocation3], %s16
      %s18 = sshll.u32 [#allocation2], 4
      %s19 = int_to_ptr.vmem [resolvable:$true] %s18
      %24 = dma.hbm_to_vmem [thread:$0]  %s0, 256, %s19, [#allocation3], 128, 128, 8
    $region5: #{tpu_custom_call.1} parent=1 // pred_fallthru
      _
    // Predicated region
    $region6: #{tpu_custom_call.1} parent=1 // pred_check
      _
    $region7: #{tpu_custom_call.1} parent=1 // pred_check_branch
      %26 = sbr.rel (0) target = $region9
    $region8: #{tpu_custom_call.1} parent=1 // pred_region
      %s28 = ssub.s32 256, 256
      %29 = vsyncadd [#allocation6], %s28
      %s30 = sshll.u32 [#allocation5], 4
      %s31 = int_to_ptr.vmem [resolvable:$true] %s30
      %36 = dma.hbm_to_vmem [thread:$0]  %s1, 256, %s31, [#allocation6], 128, 128, 8
    $region9: #{tpu_custom_call.1} parent=1 // pred_fallthru
      _
    // Predicated region
    $region10: #{tpu_custom_call.1} parent=1 // pred_check
      _
    $region11: #{tpu_custom_call.1} parent=1 // pred_check_branch
      %38 = sbr.rel (0) target = $region13
    $region12: #{tpu_custom_call.1} parent=1 // pred_region
      %s40 = ssub.s32 256, 256
      %41 = vsyncadd [#allocation6], %s40
      %s42 = sshll.u32 [#allocation7], 4
      %s43 = int_to_ptr.vmem [resolvable:$true] %s42
      %48 = dma.hbm_to_vmem [thread:$0]  %s2, 256, %s43, [#allocation6], 128, 128, 8
    $region13: #{tpu_custom_call.1} parent=1 // pred_fallthru
      _
    // Predicated region
    $region14: #{tpu_custom_call.1} parent=1 // pred_check
      _
    $region15: #{tpu_custom_call.1} parent=1 // pred_check_branch
      %50 = sbr.rel (0) target = $region17
    $region16: #{tpu_custom_call.1} parent=1 // pred_region
      %s52 = ssub.s32 7808, 7808
      %53 = vsyncadd [#allocation9], %s52
      %s54 = sshll.u32 [#allocation8], 4
      %s55 = int_to_ptr.vmem [resolvable:$true] %s54
      %60 = dma.hbm_to_vmem [thread:$0]  %s3, 7808, %s55, [#allocation9], 128, 128, 8
    $region17: #{tpu_custom_call.1} parent=1 // pred_fallthru
      _
    // Predicated region
    $region18: #{tpu_custom_call.1} parent=1 // pred_check
      _
    $region19: #{tpu_custom_call.1} parent=1 // pred_check_branch
      %62 = sbr.rel (0) target = $region21
    $region20: #{tpu_custom_call.1} parent=1 // pred_region
      %63 = dma.done [#allocation3], 256
    $region21: #{tpu_custom_call.1} parent=1 // pred_fallthru
      _
    // Predicated region
    $region22: #{tpu_custom_call.1} parent=1 // pred_check
      _
    $region23: #{tpu_custom_call.1} parent=1 // pred_check_branch
      %65 = sbr.rel (0) target = $region25
    $region24: #{tpu_custom_call.1} parent=1 // pred_region
      %66 = dma.done [#allocation6], 256
    $region25: #{tpu_custom_call.1} parent=1 // pred_fallthru
      _
    // Predicated region
    $region26: #{tpu_custom_call.1} parent=1 // pred_check
      _
    $region27: #{tpu_custom_call.1} parent=1 // pred_check_branch
      %68 = sbr.rel (0) target = $region29
    $region28: #{tpu_custom_call.1} parent=1 // pred_region
      %69 = dma.done [#allocation6], 256
    $region29: #{tpu_custom_call.1} parent=1 // pred_fallthru
      _
    // Predicated region
    $region30: #{tpu_custom_call.1} parent=1 // pred_check
      _
    $region31: #{tpu_custom_call.1} parent=1 // pred_check_branch
      %71 = sbr.rel (0) target = $region33
    $region32: #{tpu_custom_call.1} parent=1 // pred_region
      %72 = dma.done [#allocation9], 7808
    $region33: #{tpu_custom_call.1} parent=1 // pred_fallthru
      _
    %v73 = vlaneseq
    %v74 = vshrl.u32 %v73, 7
    %v75 = vadd.s32 %v74, 8
    %v76 = vadd.s32 %v74, 16
    %v77 = vadd.s32 %v74, 24
    %v78 = vadd.s32 %v74, 32
    %v79 = vadd.s32 %v74, 40
    %v80 = vadd.s32 %v74, 48
    %v81 = vadd.s32 %v74, 56
    %v82 = vlaneseq
    %v83 = vand.u32 %v82, 127
    %v84 = vshra.s32 %v74, 3
    %v85 = vshra.s32 %v75, 3
    %v86 = vshra.s32 %v76, 3
    %v87 = vshra.s32 %v77, 3
    %v88 = vshra.s32 %v78, 3
    %v89 = vshra.s32 %v79, 3
    %v90 = vshra.s32 %v80, 3
    %v91 = vshra.s32 %v81, 3
    %v92 = vshra.s32 %v83, 3
    %vm93 = vcmp.eq.s32.totalorder %v84, %v92
    %vm94 = vcmp.eq.s32.totalorder %v85, %v92
    %vm95 = vcmp.eq.s32.totalorder %v86, %v92
    %vm96 = vcmp.eq.s32.totalorder %v87, %v92
    %vm97 = vcmp.eq.s32.totalorder %v88, %v92
    %vm98 = vcmp.eq.s32.totalorder %v89, %v92
    %vm99 = vcmp.eq.s32.totalorder %v90, %v92
    %vm100 = vcmp.eq.s32.totalorder %v91, %v92
    %v101 = vsel %vm93, 0.0, -1e+30
    %v102 = vsel %vm94, 0.0, -1e+30
    %v103 = vsel %vm95, 0.0, -1e+30
    %v104 = vsel %vm96, 0.0, -1e+30
    %v105 = vsel %vm97, 0.0, -1e+30
    %v106 = vsel %vm98, 0.0, -1e+30
    %v107 = vsel %vm99, 0.0, -1e+30
    %v108 = vsel %vm100, 0.0, -1e+30
    %v109 = vld [vmem:[#allocation5] sm:$0xff]
    %v110 = vld [vmem:[#allocation5 + $0x8] sm:$0xff]
    %v111 = vld [vmem:[#allocation8] sm:$0x1]
    %v112 = vld [vmem:[#allocation8 + $0x1] sm:$0x1]
    %vm113 = vcmask 261120
    %v114 = vsel %vm113, %v109, 0.0
    %115 = vadd.xlane.f32.xlu0 %v114
    %v116 = vpop.xlane.xlu0 %115
    %v117 = vsel %vm113, %v110, 0.0
    %118 = vadd.xlane.f32.xlu0 %v117
    %v119 = vpop.xlane.xlu0 %118
    %v120 = vrcp.pop 32.0
    %v121 = vmul.f32 %v116, %v120
    %v122 = vmul.f32 %v119, %v120
    %v123 = vmul.f32 %v109, %v109
    %v124 = vmul.f32 %v110, %v110
    %v125 = vsel %vm113, %v123, 0.0
    %126 = vadd.xlane.f32.xlu0 %v125
    %v127 = vpop.xlane.xlu0 %126
    %v128 = vsel %vm113, %v124, 0.0
    %129 = vadd.xlane.f32.xlu0 %v128
    %v130 = vpop.xlane.xlu0 %129
    %v131 = vmul.f32 %v127, %v120
    %v132 = vmul.f32 %v130, %v120
    %v133 = vsub.f32 %v109, %v121
    %v134 = vsub.f32 %v110, %v122
    %v135 = vmul.f32 %v121, %v121
    %v136 = vmul.f32 %v122, %v122
    %v137 = vsub.f32 %v131, %v135
    %v138 = vsub.f32 %v132, %v136
    %v139 = vadd.f32 %v137, 1e-05
    %v140 = vadd.f32 %v138, 1e-05
    %v141 = vrsqrt.pop %v139
    %v142 = vrsqrt.pop %v140
    %v143 = vmul.f32 %v133, %v141
    %v144 = vmul.f32 %v134, %v142
    %v145 = vlaneseq
    %v146 = vshrl.u32 %v145, 7
    %v147 = vsub.s32 0, %v146
    %v148 = vrot.slane %v111, %v147
    %v149 = vmul.f32 %v143, %v148
    %v150 = vmul.f32 %v144, %v148
    %v151 = vlaneseq
    %v152 = vshrl.u32 %v151, 7
    %v153 = vsub.s32 0, %v152
    %v154 = vrot.slane %v112, %v153
    %v155 = vadd.f32 %v149, %v154
    %v156 = vadd.f32 %v150, %v154
    %v157 = vld [vmem:[#allocation7] sm:$0xff]
    %v158 = vld [vmem:[#allocation7 + $0x8] sm:$0xff]
    %v159 = vld [vmem:[#allocation8 + $0x2] sm:$0x1]
    %v160 = vld [vmem:[#allocation8 + $0x3] sm:$0x1]
    %v161 = vsel %vm113, %v157, 0.0
    %162 = vadd.xlane.f32.xlu0 %v161
    %v163 = vpop.xlane.xlu0 %162
    %v164 = vsel %vm113, %v158, 0.0
    %165 = vadd.xlane.f32.xlu0 %v164
    %v166 = vpop.xlane.xlu0 %165
    %v167 = vmul.f32 %v163, %v120
    %v168 = vmul.f32 %v166, %v120
    %v169 = vmul.f32 %v157, %v157
    %v170 = vmul.f32 %v158, %v158
    %v171 = vsel %vm113, %v169, 0.0
    %172 = vadd.xlane.f32.xlu0 %v171
    %v173 = vpop.xlane.xlu0 %172
    %v174 = vsel %vm113, %v170, 0.0
    %175 = vadd.xlane.f32.xlu0 %v174
    %v176 = vpop.xlane.xlu0 %175
    %v177 = vmul.f32 %v173, %v120
    %v178 = vmul.f32 %v176, %v120
    %v179 = vsub.f32 %v157, %v167
    %v180 = vsub.f32 %v158, %v168
    %v181 = vmul.f32 %v167, %v167
    %v182 = vmul.f32 %v168, %v168
    %v183 = vsub.f32 %v177, %v181
    %v184 = vsub.f32 %v178, %v182
    %v185 = vadd.f32 %v183, 1e-05
    %v186 = vadd.f32 %v184, 1e-05
    %v187 = vrsqrt.pop %v185
    %v188 = vrsqrt.pop %v186
    %v189 = vmul.f32 %v179, %v187
    %v190 = vmul.f32 %v180, %v188
    %v191 = vlaneseq
    %v192 = vshrl.u32 %v191, 7
    %v193 = vsub.s32 0, %v192
    %v194 = vrot.slane %v159, %v193
    %v195 = vmul.f32 %v189, %v194
    %v196 = vmul.f32 %v190, %v194
    %v197 = vlaneseq
    %v198 = vshrl.u32 %v197, 7
    %v199 = vsub.s32 0, %v198
    %v200 = vrot.slane %v160, %v199
    %v201 = vadd.f32 %v195, %v200
    %v202 = vadd.f32 %v196, %v200
    %v203 = vld [vmem:[#allocation2] sm:$0xff]
    %v204 = vld [vmem:[#allocation2 + $0x8] sm:$0xff]
    %v205 = vld [vmem:[#allocation8 + $0x8] sm:$0x1]
    %v206 = vld [vmem:[#allocation8 + $0x9] sm:$0x1]
    %v207 = vsel %vm113, %v203, 0.0
    %208 = vadd.xlane.f32.xlu0 %v207
    %v209 = vpop.xlane.xlu0 %208
    %v210 = vsel %vm113, %v204, 0.0
    %211 = vadd.xlane.f32.xlu0 %v210
    %v212 = vpop.xlane.xlu0 %211
    %v213 = vmul.f32 %v209, %v120
    %v214 = vmul.f32 %v212, %v120
    %v215 = vmul.f32 %v203, %v203
    %v216 = vmul.f32 %v204, %v204
    %v217 = vsel %vm113, %v215, 0.0
    %218 = vadd.xlane.f32.xlu0 %v217
    %v219 = vpop.xlane.xlu0 %218
    %v220 = vsel %vm113, %v216, 0.0
    %221 = vadd.xlane.f32.xlu0 %v220
    %v222 = vpop.xlane.xlu0 %221
    %v223 = vmul.f32 %v219, %v120
    %v224 = vmul.f32 %v222, %v120
    %v225 = vsub.f32 %v203, %v213
    %v226 = vsub.f32 %v204, %v214
    %v227 = vmul.f32 %v213, %v213
    %v228 = vmul.f32 %v214, %v214
    %v229 = vsub.f32 %v223, %v227
    %v230 = vsub.f32 %v224, %v228
    %v231 = vadd.f32 %v229, 1e-05
    %v232 = vadd.f32 %v230, 1e-05
    %v233 = vrsqrt.pop %v231
    %v234 = vrsqrt.pop %v232
    %v235 = vmul.f32 %v225, %v233
    %v236 = vmul.f32 %v226, %v234
    %v237 = vlaneseq
    %v238 = vshrl.u32 %v237, 7
    %v239 = vsub.s32 0, %v238
    %v240 = vrot.slane %v205, %v239
    %v241 = vmul.f32 %v235, %v240
    %v242 = vmul.f32 %v236, %v240
    %v243 = vlaneseq
    %v244 = vshrl.u32 %v243, 7
    %v245 = vsub.s32 0, %v244
    %v246 = vrot.slane %v206, %v245
    %v247 = vadd.f32 %v241, %v246
    %v248 = vadd.f32 %v242, %v246
    %v249 = vld [vmem:[#allocation8 + $0x108] sm:$0xff]
    %v250 = vld [vmem:[#allocation8 + $0x110] sm:$0xff]
    %v251 = vld [vmem:[#allocation8 + $0x118] sm:$0xff]
    %v252 = vld [vmem:[#allocation8 + $0x120] sm:$0xff]
    %v253 = vld [vmem:[#allocation8 + $0x128] sm:$0xff]
    %v254 = vld [vmem:[#allocation8 + $0x130] sm:$0xff]
    %v255 = vld [vmem:[#allocation8 + $0x138] sm:$0xff]
    %v256 = vld [vmem:[#allocation8 + $0x140] sm:$0xff]
    %v257 = vld [vmem:[#allocation8 + $0x148] sm:$0xff]
    %v258 = vld [vmem:[#allocation8 + $0x150] sm:$0xff]
    %v259 = vld [vmem:[#allocation8 + $0x158] sm:$0xff]
    %v260 = vld [vmem:[#allocation8 + $0x160] sm:$0xff]
    %v261 = vld [vmem:[#allocation8 + $0x168] sm:$0xff]
    %v262 = vld [vmem:[#allocation8 + $0x170] sm:$0xff]
    %v263 = vld [vmem:[#allocation8 + $0x178] sm:$0xff]
    %v264 = vld [vmem:[#allocation8 + $0x180] sm:$0xff]
    %v265 = vld [vmem:[#allocation8 + $0x188] sm:$0xff]
    %v266 = vld [vmem:[#allocation8 + $0x190] sm:$0xff]
    %v267 = vld [vmem:[#allocation8 + $0x198] sm:$0xff]
    %v268 = vld [vmem:[#allocation8 + $0x1a0] sm:$0xff]
    %v269 = vld [vmem:[#allocation8 + $0x1a8] sm:$0xff]
    %v270 = vld [vmem:[#allocation8 + $0x1b0] sm:$0xff]
    %v271 = vld [vmem:[#allocation8 + $0x1b8] sm:$0xff]
    %v272 = vld [vmem:[#allocation8 + $0x1c0] sm:$0xff]
    %v273 = vld [vmem:[#allocation8 + $0x1c8] sm:$0xff]
    %v274 = vld [vmem:[#allocation8 + $0x1d0] sm:$0xff]
    %v275 = vld [vmem:[#allocation8 + $0x1d8] sm:$0xff]
    %v276 = vld [vmem:[#allocation8 + $0x1e0] sm:$0xff]
    %v277 = vld [vmem:[#allocation8 + $0xf8] sm:$0x1]
    %v278 = vld [vmem:[#allocation8 + $0xf9] sm:$0x1]
    %v279 = vld [vmem:[#allocation8 + $0xfa] sm:$0x1]
    %v280 = vld [vmem:[#allocation8 + $0xfb] sm:$0x1]
    %v281 = vld [vmem:[#allocation8 + $0xfc] sm:$0x1]
    %v282 = vld [vmem:[#allocation8 + $0xfd] sm:$0x1]
    %v283 = vld [vmem:[#allocation8 + $0xfe] sm:$0x1]
    %v284 = vld [vmem:[#allocation8 + $0xff] sm:$0x1]
    %v285 = vld [vmem:[#allocation8 + $0x100] sm:$0x1]
    %v286 = vld [vmem:[#allocation8 + $0x101] sm:$0x1]
    %v287 = vsel %vm113, %v247, 0.0
    %288 = vadd.xlane.f32.xlu0 %v287
    %v289 = vpop.xlane.xlu0 %288
    %v290 = vsel %vm113, %v248, 0.0
    %291 = vadd.xlane.f32.xlu0 %v290
    %v292 = vpop.xlane.xlu0 %291
    %v293 = vmul.f32 %v289, %v120
    %v294 = vmul.f32 %v292, %v120
    %v295 = vmul.f32 %v247, %v247
    %v296 = vmul.f32 %v248, %v248
    %v297 = vsel %vm113, %v295, 0.0
    %298 = vadd.xlane.f32.xlu0 %v297
    %v299 = vpop.xlane.xlu0 %298
    %v300 = vsel %vm113, %v296, 0.0
    %301 = vadd.xlane.f32.xlu0 %v300
    %v302 = vpop.xlane.xlu0 %301
    %v303 = vmul.f32 %v299, %v120
    %v304 = vmul.f32 %v302, %v120
    %v305 = vsub.f32 %v247, %v293
    %v306 = vsub.f32 %v248, %v294
    %v307 = vmul.f32 %v293, %v293
    %v308 = vmul.f32 %v294, %v294
    %v309 = vsub.f32 %v303, %v307
    %v310 = vsub.f32 %v304, %v308
    %v311 = vadd.f32 %v309, 1e-05
    %v312 = vadd.f32 %v310, 1e-05
    %v313 = vrsqrt.pop %v311
    %v314 = vrsqrt.pop %v312
    %v315 = vmul.f32 %v305, %v313
    %v316 = vmul.f32 %v306, %v314
    %v317 = vlaneseq
    %v318 = vshrl.u32 %v317, 7
    %v319 = vsub.s32 0, %v318
    %v320 = vrot.slane %v277, %v319
    %v321 = vmul.f32 %v315, %v320
    %v322 = vmul.f32 %v316, %v320
    %v323 = vlaneseq
    %v324 = vshrl.u32 %v323, 7
    %v325 = vsub.s32 0, %v324
    %v326 = vrot.slane %v278, %v325
    %v327 = vadd.f32 %v321, %v326
    %v328 = vadd.f32 %v322, %v326
    %v330 = vsel %vm113, %v327, 0
    %v333 = vsel %vm113, %v328, 0
    %v336 = vsel %vm113, %v155, 0
    %v339 = vsel %vm113, %v156, 0
    %v342 = vsel %vm113, %v201, 0
    %v345 = vsel %vm113, %v202, 0
    %347 = vmatprep.subr.mxu0 0.0
    %348 = vmatpush1.msra.mxu0 %v249
    %349 = vmatprep.subr.mxu0 0.0
    %350 = vmatpush1.msra.mxu0 %v250
    %351 = vmatprep.subr.mxu0 0.0
    %352 = vmatpush1.msra.mxu0 %v251
    %353 = vmatprep.subr.mxu0 0.0
    %354 = vmatpush1.msra.mxu0 %v252
    %355 = vmatprep.subr.mxu0 0.0
    %356 = vmatpush1.msra.mxu0 0.0
    %357 = vmatprep.subr.mxu0 0.0
    %358 = vmatpush1.msra.mxu0 0.0
    %359 = vmatprep.subr.mxu0 0.0
    %360 = vmatpush1.msra.mxu0 0.0
    %361 = vmatprep.subr.mxu0 0.0
    %362 = vmatpush1.msra.mxu0 0.0
    %363 = vmatprep.subr.mxu0 0.0
    %364 = vmatpush1.msra.mxu0 0.0
    %365 = vmatprep.subr.mxu0 0.0
    %366 = vmatpush1.msra.mxu0 0.0
    %367 = vmatprep.subr.mxu0 0.0
    %368 = vmatpush1.msra.mxu0 0.0
    %369 = vmatprep.subr.mxu0 0.0
    %370 = vmatpush1.msra.mxu0 0.0
    %371 = vmatprep.subr.mxu0 0.0
    %372 = vmatpush1.msra.mxu0 0.0
    %373 = vmatprep.subr.mxu0 0.0
    %374 = vmatpush1.msra.mxu0 0.0
    %375 = vmatprep.subr.mxu0 0.0
    %376 = vmatpush1.msra.mxu0 0.0
    %377 = vmatprep.subr.mxu0 0.0
    %378 = vmatpush1.msra.mxu0 0.0
    %379 = vmatprep.subr.mxu0 0.0
    %380 = vmatpush1.msra.mxu0 0.0
    %381 = vmatprep.subr.mxu0 0.0
    %382 = vmatpush1.msra.mxu0 0.0
    %383 = vmatprep.subr.mxu0 0.0
    %384 = vmatpush1.msra.mxu0 0.0
    %385 = vmatprep.subr.mxu0 0.0
    %386 = vmatpush1.msra.mxu0 0.0
    %387 = vmatprep.subr.mxu0 0.0
    %388 = vmatpush1.msra.mxu0 0.0
    %389 = vmatprep.subr.mxu0 0.0
    %390 = vmatpush1.msra.mxu0 0.0
    %391 = vmatprep.subr.mxu0 0.0
    %392 = vmatpush1.msra.mxu0 0.0
    %393 = vmatprep.subr.mxu0 0.0
    %394 = vmatpush1.msra.mxu0 0.0
    %395 = vmatprep.subr.mxu0 0.0
    %396 = vmatpush1.msra.mxu0 0.0
    %397 = vmatprep.subr.mxu0 0.0
    %398 = vmatpush1.msra.mxu0 0.0
    %399 = vmatprep.subr.mxu0 0.0
    %400 = vmatpush1.msra.mxu0 0.0
    %401 = vmatprep.subr.mxu0 0.0
    %402 = vmatpush1.msra.mxu0 0.0
    %403 = vmatprep.subr.mxu0 0.0
    %404 = vmatpush1.msra.mxu0 0.0
    %405 = vmatprep.subr.mxu0 0.0
    %406 = vmatpush1.msra.mxu0 0.0
    %407 = vmatprep.subr.mxu0 0.0
    %408 = vmatpush1.msra.mxu0 0.0
    %409 = vmatprep.subr.mxu0 0.0
    %410 = vmatpush1.msra.mxu0 0.0
    %411 = vmatprep.mubr.f32.mxu0 0.0
    %412 = vmatmul.mubr.f32.gmra.mrb[0].mxu0 %v330
    %v413 = vpop.f32.mrb[0].mxu0
    %v414 = vadd.f32 0.0, %v413
    %v415 = vpop.f32.mrb[0].mxu0
    %416 = vmatprep.mubr.f32.mxu0 0.0
    %417 = vmatmul.mubr.f32.gmra.mrb[0].mxu0 %v333
    %v418 = vpop.f32.mrb[0].mxu0
    %v419 = vadd.f32 0.0, %v418
    %v420 = vpop.f32.mrb[0].mxu0
    %421 = vmatprep.mubr.f32.mxu0 0.0
    %422 = vmatmul.mubr.f32.gmra.mrb[0].mxu0 %v336
    %v423 = vpop.f32.mrb[0].mxu0
    %v424 = vadd.f32 0.0, %v423
    %v425 = vpop.f32.mrb[0].mxu0
    %426 = vmatprep.mubr.f32.mxu0 0.0
    %427 = vmatmul.mubr.f32.gmra.mrb[0].mxu0 %v339
    %v428 = vpop.f32.mrb[0].mxu0
    %v429 = vadd.f32 0.0, %v428
    %v430 = vpop.f32.mrb[0].mxu0
    %431 = vmatprep.mubr.f32.mxu0 0.0
    %432 = vmatmul.mubr.f32.gmra.mrb[0].mxu0 %v342
    %v433 = vpop.f32.mrb[0].mxu0
    %v434 = vadd.f32 0.0, %v433
    %v435 = vpop.f32.mrb[0].mxu0
    %436 = vmatprep.mubr.f32.mxu0 0.0
    %437 = vmatmul.mubr.f32.gmra.mrb[0].mxu0 %v345
    %v438 = vpop.f32.mrb[0].mxu0
    %v439 = vadd.f32 0.0, %v438
    %v440 = vpop.f32.mrb[0].mxu0
    %441 = vdwg.mxu0
    %444 = vrot.lane.b32.xlu0 %v414, 120
    %v445 = vpop.permute.xlu0 %444
    %446 = vrot.lane.b32.xlu0 %v419, 120
    %v447 = vpop.permute.xlu0 %446
    %448 = vrot.lane.b32.xlu0 %v414, 112
    %v449 = vpop.permute.xlu0 %448
    %450 = vrot.lane.b32.xlu0 %v419, 112
    %v451 = vpop.permute.xlu0 %450
    %452 = vrot.lane.b32.xlu0 %v414, 104
    %v453 = vpop.permute.xlu0 %452
    %454 = vrot.lane.b32.xlu0 %v419, 104
    %v455 = vpop.permute.xlu0 %454
    %458 = vrot.lane.b32.xlu0 %v424, 120
    %v459 = vpop.permute.xlu0 %458
    %460 = vrot.lane.b32.xlu0 %v429, 120
    %v461 = vpop.permute.xlu0 %460
    %462 = vrot.lane.b32.xlu0 %v424, 112
    %v463 = vpop.permute.xlu0 %462
    %464 = vrot.lane.b32.xlu0 %v429, 112
    %v465 = vpop.permute.xlu0 %464
    %466 = vrot.lane.b32.xlu0 %v424, 104
    %v467 = vpop.permute.xlu0 %466
    %468 = vrot.lane.b32.xlu0 %v429, 104
    %v469 = vpop.permute.xlu0 %468
    %472 = vrot.lane.b32.xlu0 %v434, 120
    %v473 = vpop.permute.xlu0 %472
    %474 = vrot.lane.b32.xlu0 %v439, 120
    %v475 = vpop.permute.xlu0 %474
    %476 = vrot.lane.b32.xlu0 %v434, 112
    %v477 = vpop.permute.xlu0 %476
    %478 = vrot.lane.b32.xlu0 %v439, 112
    %v479 = vpop.permute.xlu0 %478
    %480 = vrot.lane.b32.xlu0 %v434, 104
    %v481 = vpop.permute.xlu0 %480
    %482 = vrot.lane.b32.xlu0 %v439, 104
    %v483 = vpop.permute.xlu0 %482
    %484 = vrot.lane.b32.xlu0 %v424, 96
    %v485 = vpop.permute.xlu0 %484
    %486 = vrot.lane.b32.xlu0 %v429, 96
    %v487 = vpop.permute.xlu0 %486
    %488 = vrot.lane.b32.xlu0 %v459, 96
    %v489 = vpop.permute.xlu0 %488
    %490 = vrot.lane.b32.xlu0 %v461, 96
    %v491 = vpop.permute.xlu0 %490
    %492 = vrot.lane.b32.xlu0 %v463, 96
    %v493 = vpop.permute.xlu0 %492
    %494 = vrot.lane.b32.xlu0 %v465, 96
    %v495 = vpop.permute.xlu0 %494
    %496 = vrot.lane.b32.xlu0 %v467, 96
    %v497 = vpop.permute.xlu0 %496
    %498 = vrot.lane.b32.xlu0 %v469, 96
    %v499 = vpop.permute.xlu0 %498
    %vm500 = vcmask 64512
    %v501 = vsel %vm500, %v414, 0
    %v503 = vsel %vm500, %v419, 0
    %v505 = vsel %vm500, %v445, 0
    %v507 = vsel %vm500, %v447, 0
    %v509 = vsel %vm500, %v449, 0
    %v511 = vsel %vm500, %v451, 0
    %v513 = vsel %vm500, %v453, 0
    %v515 = vsel %vm500, %v455, 0
    %v517 = vsel %vm500, %v485, 0
    %v519 = vsel %vm500, %v487, 0
    %v521 = vsel %vm500, %v489, 0
    %v523 = vsel %vm500, %v491, 0
    %v525 = vsel %vm500, %v493, 0
    %v527 = vsel %vm500, %v495, 0
    %v529 = vsel %vm500, %v497, 0
    %v531 = vsel %vm500, %v499, 0
    %533 = vmatprep.subr.mxu0 0.0
    %534 = vmatpush1.xpose.msra.mxu0 %v517
    %535 = vmatprep.subr.mxu0 0.0
    %536 = vmatpush1.xpose.msra.mxu0 %v519
    %537 = vmatprep.subr.mxu0 0.0
    %538 = vmatpush1.xpose.msra.mxu0 %v521
    %539 = vmatprep.subr.mxu0 0.0
    %540 = vmatpush1.xpose.msra.mxu0 %v523
    %541 = vmatprep.subr.mxu0 0.0
    %542 = vmatpush1.xpose.msra.mxu0 %v525
    %543 = vmatprep.subr.mxu0 0.0
    %544 = vmatpush1.xpose.msra.mxu0 %v527
    %545 = vmatprep.subr.mxu0 0.0
    %546 = vmatpush1.xpose.msra.mxu0 %v529
    %547 = vmatprep.subr.mxu0 0.0
    %548 = vmatpush1.xpose.msra.mxu0 %v531
    %549 = vmatprep.subr.mxu0 0.0
    %550 = vmatpush1.xpose.msra.mxu0 0.0
    %551 = vmatprep.subr.mxu0 0.0
    %552 = vmatpush1.xpose.msra.mxu0 0.0
    %553 = vmatprep.subr.mxu0 0.0
    %554 = vmatpush1.xpose.msra.mxu0 0.0
    %555 = vmatprep.subr.mxu0 0.0
    %556 = vmatpush1.xpose.msra.mxu0 0.0
    %557 = vmatprep.subr.mxu0 0.0
    %558 = vmatpush1.xpose.msra.mxu0 0.0
    %559 = vmatprep.subr.mxu0 0.0
    %560 = vmatpush1.xpose.msra.mxu0 0.0
    %561 = vmatprep.subr.mxu0 0.0
    %562 = vmatpush1.xpose.msra.mxu0 0.0
    %563 = vmatprep.subr.mxu0 0.0
    %564 = vmatpush1.xpose.msra.mxu0 0.0
    %565 = vmatprep.subr.mxu0 0.0
    %566 = vmatpush1.xpose.msra.mxu0 0.0
    %567 = vmatprep.subr.mxu0 0.0
    %568 = vmatpush1.xpose.msra.mxu0 0.0
    %569 = vmatprep.subr.mxu0 0.0
    %570 = vmatpush1.xpose.msra.mxu0 0.0
    %571 = vmatprep.subr.mxu0 0.0
    %572 = vmatpush1.xpose.msra.mxu0 0.0
    %573 = vmatprep.subr.mxu0 0.0
    %574 = vmatpush1.xpose.msra.mxu0 0.0
    %575 = vmatprep.subr.mxu0 0.0
    %576 = vmatpush1.xpose.msra.mxu0 0.0
    %577 = vmatprep.subr.mxu0 0.0
    %578 = vmatpush1.xpose.msra.mxu0 0.0
    %579 = vmatprep.subr.mxu0 0.0
    %580 = vmatpush1.xpose.msra.mxu0 0.0
    %581 = vmatprep.subr.mxu0 0.0
    %582 = vmatpush1.xpose.msra.mxu0 0.0
    %583 = vmatprep.subr.mxu0 0.0
    %584 = vmatpush1.xpose.msra.mxu0 0.0
    %585 = vmatprep.subr.mxu0 0.0
    %586 = vmatpush1.xpose.msra.mxu0 0.0
    %587 = vmatprep.subr.mxu0 0.0
    %588 = vmatpush1.xpose.msra.mxu0 0.0
    %589 = vmatprep.subr.mxu0 0.0
    %590 = vmatpush1.xpose.msra.mxu0 0.0
    %591 = vmatprep.subr.mxu0 0.0
    %592 = vmatpush1.xpose.msra.mxu0 0.0
    %593 = vmatprep.subr.mxu0 0.0
    %594 = vmatpush1.xpose.msra.mxu0 0.0
    %595 = vmatprep.subr.mxu0 0.0
    %596 = vmatpush1.xpose.msra.mxu0 0.0
    %597 = vmatprep.mubr.f32.mxu0 0.0
    %598 = vmatmul.mubr.f32.gmra.mrb[0].mxu0 %v501
    %v599 = vpop.f32.mrb[0].mxu0
    %v600 = vadd.f32 0.0, %v599
    %v601 = vpop.f32.mrb[0].mxu0
    %602 = vmatprep.mubr.f32.mxu0 0.0
    %603 = vmatmul.mubr.f32.gmra.mrb[0].mxu0 %v503
    %v604 = vpop.f32.mrb[0].mxu0
    %v605 = vadd.f32 0.0, %v604
    %v606 = vpop.f32.mrb[0].mxu0
    %607 = vmatprep.mubr.f32.mxu0 0.0
    %608 = vmatmul.mubr.f32.gmra.mrb[0].mxu0 %v505
    %v609 = vpop.f32.mrb[0].mxu0
    %v610 = vadd.f32 0.0, %v609
    %v611 = vpop.f32.mrb[0].mxu0
    %612 = vmatprep.mubr.f32.mxu0 0.0
    %613 = vmatmul.mubr.f32.gmra.mrb[0].mxu0 %v507
    %v614 = vpop.f32.mrb[0].mxu0
    %v615 = vadd.f32 0.0, %v614
    %v616 = vpop.f32.mrb[0].mxu0
    %617 = vmatprep.mubr.f32.mxu0 0.0
    %618 = vmatmul.mubr.f32.gmra.mrb[0].mxu0 %v509
    %v619 = vpop.f32.mrb[0].mxu0
    %v620 = vadd.f32 0.0, %v619
    %v621 = vpop.f32.mrb[0].mxu0
    %622 = vmatprep.mubr.f32.mxu0 0.0
    %623 = vmatmul.mubr.f32.gmra.mrb[0].mxu0 %v511
    %v624 = vpop.f32.mrb[0].mxu0
    %v625 = vadd.f32 0.0, %v624
    %v626 = vpop.f32.mrb[0].mxu0
    %627 = vmatprep.mubr.f32.mxu0 0.0
    %628 = vmatmul.mubr.f32.gmra.mrb[0].mxu0 %v513
    %v629 = vpop.f32.mrb[0].mxu0
    %v630 = vadd.f32 0.0, %v629
    %v631 = vpop.f32.mrb[0].mxu0
    %632 = vmatprep.mubr.f32.mxu0 0.0
    %633 = vmatmul.mubr.f32.gmra.mrb[0].mxu0 %v515
    %v634 = vpop.f32.mrb[0].mxu0
    %v635 = vadd.f32 0.0, %v634
    %v636 = vpop.f32.mrb[0].mxu0
    %637 = vdwg.mxu0
    %v638 = vmul.f32 %v600, 0.35355338
    %v639 = vmul.f32 %v605, 0.35355338
    %v640 = vmul.f32 %v610, 0.35355338
    %v641 = vmul.f32 %v615, 0.35355338
    %v642 = vmul.f32 %v620, 0.35355338
    %v643 = vmul.f32 %v625, 0.35355338
    %v644 = vmul.f32 %v630, 0.35355338
    %v645 = vmul.f32 %v635, 0.35355338
    %v646 = vadd.f32 %v638, %v101
    %v647 = vadd.f32 %v639, %v102
    %v648 = vadd.f32 %v640, %v103
    %v649 = vadd.f32 %v641, %v104
    %v650 = vadd.f32 %v642, %v105
    %v651 = vadd.f32 %v643, %v106
    %v652 = vadd.f32 %v644, %v107
    %v653 = vadd.f32 %v645, %v108
    %vm654 = vcmask 523264
    %v655 = vsel %vm654, %v646, -inf
    %656 = vmax.xlane.f32.xlu0 %v655
    %v657 = vpop.xlane.xlu0 %656
    %v658 = vsel %vm654, %v647, -inf
    %659 = vmax.xlane.f32.xlu0 %v658
    %v660 = vpop.xlane.xlu0 %659
    %v661 = vsel %vm654, %v648, -inf
    %662 = vmax.xlane.f32.xlu0 %v661
    %v663 = vpop.xlane.xlu0 %662
    %v664 = vsel %vm654, %v649, -inf
    %665 = vmax.xlane.f32.xlu0 %v664
    %v666 = vpop.xlane.xlu0 %665
    %v667 = vsel %vm654, %v650, -inf
    %668 = vmax.xlane.f32.xlu0 %v667
    %v669 = vpop.xlane.xlu0 %668
    %v670 = vsel %vm654, %v651, -inf
    %671 = vmax.xlane.f32.xlu0 %v670
    %v672 = vpop.xlane.xlu0 %671
    %v673 = vsel %vm654, %v652, -inf
    %674 = vmax.xlane.f32.xlu0 %v673
    %v675 = vpop.xlane.xlu0 %674
    %v676 = vsel %vm654, %v653, -inf
    %677 = vmax.xlane.f32.xlu0 %v676
    %v678 = vpop.xlane.xlu0 %677
    %v679 = vsub.f32 %v646, %v657
    %v680 = vsub.f32 %v647, %v660
    %v681 = vsub.f32 %v648, %v663
    %v682 = vsub.f32 %v649, %v666
    %v683 = vsub.f32 %v650, %v669
    %v684 = vsub.f32 %v651, %v672
    %v685 = vsub.f32 %v652, %v675
    %v686 = vsub.f32 %v653, %v678
    %v687 = vmul.f32 %v679, 1.442695
    %v688 = vpow.pop %v687
    %v689 = vmul.f32 %v680, 1.442695
    %v690 = vpow.pop %v689
    %v691 = vmul.f32 %v681, 1.442695
    %v692 = vpow.pop %v691
    %v693 = vmul.f32 %v682, 1.442695
    %v694 = vpow.pop %v693
    %v695 = vmul.f32 %v683, 1.442695
    %v696 = vpow.pop %v695
    %v697 = vmul.f32 %v684, 1.442695
    %v698 = vpow.pop %v697
    %v699 = vmul.f32 %v685, 1.442695
    %v700 = vpow.pop %v699
    %v701 = vmul.f32 %v686, 1.442695
    %v702 = vpow.pop %v701
    %v703 = vsel %vm654, %v688, 0.0
    %704 = vadd.xlane.f32.xlu0 %v703
    %v705 = vpop.xlane.xlu0 %704
    %v706 = vsel %vm654, %v690, 0.0
    %707 = vadd.xlane.f32.xlu0 %v706
    %v708 = vpop.xlane.xlu0 %707
    %v709 = vsel %vm654, %v692, 0.0
    %710 = vadd.xlane.f32.xlu0 %v709
    %v711 = vpop.xlane.xlu0 %710
    %v712 = vsel %vm654, %v694, 0.0
    %713 = vadd.xlane.f32.xlu0 %v712
    %v714 = vpop.xlane.xlu0 %713
    %v715 = vsel %vm654, %v696, 0.0
    %716 = vadd.xlane.f32.xlu0 %v715
    %v717 = vpop.xlane.xlu0 %716
    %v718 = vsel %vm654, %v698, 0.0
    %719 = vadd.xlane.f32.xlu0 %v718
    %v720 = vpop.xlane.xlu0 %719
    %v721 = vsel %vm654, %v700, 0.0
    %722 = vadd.xlane.f32.xlu0 %v721
    %v723 = vpop.xlane.xlu0 %722
    %v724 = vsel %vm654, %v702, 0.0
    %725 = vadd.xlane.f32.xlu0 %v724
    %v726 = vpop.xlane.xlu0 %725
    %v727 = vrcp.pop %v705
    %v728 = vrcp.pop %v708
    %v729 = vrcp.pop %v711
    %v730 = vrcp.pop %v714
    %v731 = vrcp.pop %v717
    %v732 = vrcp.pop %v720
    %v733 = vrcp.pop %v723
    %v734 = vrcp.pop %v726
    %v735 = vmul.f32 %v688, %v727
    %v736 = vmul.f32 %v690, %v728
    %v737 = vmul.f32 %v692, %v729
    %v738 = vmul.f32 %v694, %v730
    %v739 = vmul.f32 %v696, %v731
    %v740 = vmul.f32 %v698, %v732
    %v741 = vmul.f32 %v700, %v733
    %v742 = vmul.f32 %v702, %v734
    %743 = vrot.lane.b32.xlu0 %v434, 64
    %v744 = vpop.permute.xlu0 %743
    %745 = vrot.lane.b32.xlu0 %v439, 64
    %v746 = vpop.permute.xlu0 %745
    %747 = vrot.lane.b32.xlu0 %v473, 64
    %v748 = vpop.permute.xlu0 %747
    %749 = vrot.lane.b32.xlu0 %v475, 64
    %v750 = vpop.permute.xlu0 %749
    %751 = vrot.lane.b32.xlu0 %v477, 64
    %v752 = vpop.permute.xlu0 %751
    %753 = vrot.lane.b32.xlu0 %v479, 64
    %v754 = vpop.permute.xlu0 %753
    %755 = vrot.lane.b32.xlu0 %v481, 64
    %v756 = vpop.permute.xlu0 %755
    %757 = vrot.lane.b32.xlu0 %v483, 64
    %v758 = vpop.permute.xlu0 %757
    %v768 = vsel %vm654, %v735, 0
    %v771 = vsel %vm654, %v736, 0
    %v774 = vsel %vm654, %v737, 0
    %v777 = vsel %vm654, %v738, 0
    %v780 = vsel %vm654, %v739, 0
    %v783 = vsel %vm654, %v740, 0
    %v786 = vsel %vm654, %v741, 0
    %v789 = vsel %vm654, %v742, 0
    %791 = vmatprep.subr.mxu0 0.0
    %792 = vmatpush1.msra.mxu0 %v744
    %793 = vmatprep.subr.mxu0 0.0
    %794 = vmatpush1.msra.mxu0 %v746
    %795 = vmatprep.subr.mxu0 0.0
    %796 = vmatpush1.msra.mxu0 %v748
    %797 = vmatprep.subr.mxu0 0.0
    %798 = vmatpush1.msra.mxu0 %v750
    %799 = vmatprep.subr.mxu0 0.0
    %800 = vmatpush1.msra.mxu0 %v752
    %801 = vmatprep.subr.mxu0 0.0
    %802 = vmatpush1.msra.mxu0 %v754
    %803 = vmatprep.subr.mxu0 0.0
    %804 = vmatpush1.msra.mxu0 %v756
    %805 = vmatprep.subr.mxu0 0.0
    %806 = vmatpush1.msra.mxu0 %v758
    %807 = vmatprep.subr.mxu0 0.0
    %808 = vmatpush1.msra.mxu0 0.0
    %809 = vmatprep.subr.mxu0 0.0
    %810 = vmatpush1.msra.mxu0 0.0
    %811 = vmatprep.subr.mxu0 0.0
    %812 = vmatpush1.msra.mxu0 0.0
    %813 = vmatprep.subr.mxu0 0.0
    %814 = vmatpush1.msra.mxu0 0.0
    %815 = vmatprep.subr.mxu0 0.0
    %816 = vmatpush1.msra.mxu0 0.0
    %817 = vmatprep.subr.mxu0 0.0
    %818 = vmatpush1.msra.mxu0 0.0
    %819 = vmatprep.subr.mxu0 0.0
    %820 = vmatpush1.msra.mxu0 0.0
    %821 = vmatprep.subr.mxu0 0.0
    %822 = vmatpush1.msra.mxu0 0.0
    %823 = vmatprep.subr.mxu0 0.0
    %824 = vmatpush1.msra.mxu0 0.0
    %825 = vmatprep.subr.mxu0 0.0
    %826 = vmatpush1.msra.mxu0 0.0
    %827 = vmatprep.subr.mxu0 0.0
    %828 = vmatpush1.msra.mxu0 0.0
    %829 = vmatprep.subr.mxu0 0.0
    %830 = vmatpush1.msra.mxu0 0.0
    %831 = vmatprep.subr.mxu0 0.0
    %832 = vmatpush1.msra.mxu0 0.0
    %833 = vmatprep.subr.mxu0 0.0
    %834 = vmatpush1.msra.mxu0 0.0
    %835 = vmatprep.subr.mxu0 0.0
    %836 = vmatpush1.msra.mxu0 0.0
    %837 = vmatprep.subr.mxu0 0.0
    %838 = vmatpush1.msra.mxu0 0.0
    %839 = vmatprep.subr.mxu0 0.0
    %840 = vmatpush1.msra.mxu0 0.0
    %841 = vmatprep.subr.mxu0 0.0
    %842 = vmatpush1.msra.mxu0 0.0
    %843 = vmatprep.subr.mxu0 0.0
    %844 = vmatpush1.msra.mxu0 0.0
    %845 = vmatprep.subr.mxu0 0.0
    %846 = vmatpush1.msra.mxu0 0.0
    %847 = vmatprep.subr.mxu0 0.0
    %848 = vmatpush1.msra.mxu0 0.0
    %849 = vmatprep.subr.mxu0 0.0
    %850 = vmatpush1.msra.mxu0 0.0
    %851 = vmatprep.subr.mxu0 0.0
    %852 = vmatpush1.msra.mxu0 0.0
    %853 = vmatprep.subr.mxu0 0.0
    %854 = vmatpush1.msra.mxu0 0.0
    %855 = vmatprep.mubr.f32.mxu0 0.0
    %856 = vmatmul.mubr.f32.gmra.mrb[0].mxu0 %v768
    %v857 = vpop.f32.mrb[0].mxu0
    %v858 = vadd.f32 0.0, %v857
    %v859 = vpop.f32.mrb[0].mxu0
    %860 = vmatprep.mubr.f32.mxu0 0.0
    %861 = vmatmul.mubr.f32.gmra.mrb[0].mxu0 %v771
    %v862 = vpop.f32.mrb[0].mxu0
    %v863 = vadd.f32 0.0, %v862
    %v864 = vpop.f32.mrb[0].mxu0
    %865 = vmatprep.mubr.f32.mxu0 0.0
    %866 = vmatmul.mubr.f32.gmra.mrb[0].mxu0 %v774
    %v867 = vpop.f32.mrb[0].mxu0
    %v868 = vadd.f32 0.0, %v867
    %v869 = vpop.f32.mrb[0].mxu0
    %870 = vmatprep.mubr.f32.mxu0 0.0
    %871 = vmatmul.mubr.f32.gmra.mrb[0].mxu0 %v777
    %v872 = vpop.f32.mrb[0].mxu0
    %v873 = vadd.f32 0.0, %v872
    %v874 = vpop.f32.mrb[0].mxu0
    %875 = vmatprep.mubr.f32.mxu0 0.0
    %876 = vmatmul.mubr.f32.gmra.mrb[0].mxu0 %v780
    %v877 = vpop.f32.mrb[0].mxu0
    %v878 = vadd.f32 0.0, %v877
    %v879 = vpop.f32.mrb[0].mxu0
    %880 = vmatprep.mubr.f32.mxu0 0.0
    %881 = vmatmul.mubr.f32.gmra.mrb[0].mxu0 %v783
    %v882 = vpop.f32.mrb[0].mxu0
    %v883 = vadd.f32 0.0, %v882
    %v884 = vpop.f32.mrb[0].mxu0
    %885 = vmatprep.mubr.f32.mxu0 0.0
    %886 = vmatmul.mubr.f32.gmra.mrb[0].mxu0 %v786
    %v887 = vpop.f32.mrb[0].mxu0
    %v888 = vadd.f32 0.0, %v887
    %v889 = vpop.f32.mrb[0].mxu0
    %890 = vmatprep.mubr.f32.mxu0 0.0
    %891 = vmatmul.mubr.f32.gmra.mrb[0].mxu0 %v789
    %v892 = vpop.f32.mrb[0].mxu0
    %v893 = vadd.f32 0.0, %v892
    %v894 = vpop.f32.mrb[0].mxu0
    %895 = vdwg.mxu0
    %898 = vrot.lane.b32.xlu0 %v868, 8
    %v899 = vpop.permute.xlu0 %898
    %900 = vrot.lane.b32.xlu0 %v873, 8
    %v901 = vpop.permute.xlu0 %900
    %906 = vrot.lane.b32.xlu0 %v878, 16
    %v907 = vpop.permute.xlu0 %906
    %908 = vrot.lane.b32.xlu0 %v883, 16
    %v909 = vpop.permute.xlu0 %908
    %914 = vrot.lane.b32.xlu0 %v888, 24
    %v915 = vpop.permute.xlu0 %914
    %916 = vrot.lane.b32.xlu0 %v893, 24
    %v917 = vpop.permute.xlu0 %916
    %v920 = vsel %vm500, %v858, %v899
    %v921 = vsel %vm500, %v863, %v901
    %vm922 = vcmask 130048
    %v923 = vsel %vm922, %v920, %v907
    %v924 = vsel %vm922, %v921, %v909
    %vm925 = vcmask 195584
    %v926 = vsel %vm925, %v923, %v915
    %v927 = vsel %vm925, %v924, %v917
    %v928 = vlaneseq
    %v929 = vshrl.u32 %v928, 7
    %v930 = vsub.s32 0, %v929
    %v931 = vrot.slane %v283, %v930
    %v933 = vsel %vm113, %v926, 0
    %v936 = vsel %vm113, %v927, 0
    %938 = vmatprep.subr.mxu0 0.0
    %939 = vmatpush1.msra.mxu0 %v253
    %940 = vmatprep.subr.mxu0 0.0
    %941 = vmatpush1.msra.mxu0 %v254
    %942 = vmatprep.subr.mxu0 0.0
    %943 = vmatpush1.msra.mxu0 %v255
    %944 = vmatprep.subr.mxu0 0.0
    %945 = vmatpush1.msra.mxu0 %v256
    %946 = vmatprep.subr.mxu0 0.0
    %947 = vmatpush1.msra.mxu0 0.0
    %948 = vmatprep.subr.mxu0 0.0
    %949 = vmatpush1.msra.mxu0 0.0
    %950 = vmatprep.subr.mxu0 0.0
    %951 = vmatpush1.msra.mxu0 0.0
    %952 = vmatprep.subr.mxu0 0.0
    %953 = vmatpush1.msra.mxu0 0.0
    %954 = vmatprep.subr.mxu0 0.0
    %955 = vmatpush1.msra.mxu0 0.0
    %956 = vmatprep.subr.mxu0 0.0
    %957 = vmatpush1.msra.mxu0 0.0
    %958 = vmatprep.subr.mxu0 0.0
    %959 = vmatpush1.msra.mxu0 0.0
    %960 = vmatprep.subr.mxu0 0.0
    %961 = vmatpush1.msra.mxu0 0.0
    %962 = vmatprep.subr.mxu0 0.0
    %963 = vmatpush1.msra.mxu0 0.0
    %964 = vmatprep.subr.mxu0 0.0
    %965 = vmatpush1.msra.mxu0 0.0
    %966 = vmatprep.subr.mxu0 0.0
    %967 = vmatpush1.msra.mxu0 0.0
    %968 = vmatprep.subr.mxu0 0.0
    %969 = vmatpush1.msra.mxu0 0.0
    %970 = vmatprep.subr.mxu0 0.0
    %971 = vmatpush1.msra.mxu0 0.0
    %972 = vmatprep.subr.mxu0 0.0
    %973 = vmatpush1.msra.mxu0 0.0
    %974 = vmatprep.subr.mxu0 0.0
    %975 = vmatpush1.msra.mxu0 0.0
    %976 = vmatprep.subr.mxu0 0.0
    %977 = vmatpush1.msra.mxu0 0.0
    %978 = vmatprep.subr.mxu0 0.0
    %979 = vmatpush1.msra.mxu0 0.0
    %980 = vmatprep.subr.mxu0 0.0
    %981 = vmatpush1.msra.mxu0 0.0
    %982 = vmatprep.subr.mxu0 0.0
    %983 = vmatpush1.msra.mxu0 0.0
    %984 = vmatprep.subr.mxu0 0.0
    %985 = vmatpush1.msra.mxu0 0.0
    %986 = vmatprep.subr.mxu0 0.0
    %987 = vmatpush1.msra.mxu0 0.0
    %988 = vmatprep.subr.mxu0 0.0
    %989 = vmatpush1.msra.mxu0 0.0
    %990 = vmatprep.subr.mxu0 0.0
    %991 = vmatpush1.msra.mxu0 0.0
    %992 = vmatprep.subr.mxu0 0.0
    %993 = vmatpush1.msra.mxu0 0.0
    %994 = vmatprep.subr.mxu0 0.0
    %995 = vmatpush1.msra.mxu0 0.0
    %996 = vmatprep.subr.mxu0 0.0
    %997 = vmatpush1.msra.mxu0 0.0
    %998 = vmatprep.subr.mxu0 0.0
    %999 = vmatpush1.msra.mxu0 0.0
    %1000 = vmatprep.subr.mxu0 0.0
    %1001 = vmatpush1.msra.mxu0 0.0
    %1002 = vmatprep.mubr.f32.mxu0 0.0
    %1003 = vmatmul.mubr.f32.gmra.mrb[0].mxu0 %v933
    %v1004 = vpop.f32.mrb[0].mxu0
    %v1005 = vadd.f32 %v931, %v1004
    %v1006 = vpop.f32.mrb[0].mxu0
    %1007 = vmatprep.mubr.f32.mxu0 0.0
    %1008 = vmatmul.mubr.f32.gmra.mrb[0].mxu0 %v936
    %v1009 = vpop.f32.mrb[0].mxu0
    %v1010 = vadd.f32 %v931, %v1009
    %v1011 = vpop.f32.mrb[0].mxu0
    %1012 = vdwg.mxu0
    %v1013 = vadd.f32 %v1005, %v327
    %v1014 = vadd.f32 %v1010, %v328
    %v1015 = vsel %vm113, %v1013, 0.0
    %1016 = vadd.xlane.f32.xlu0 %v1015
    %v1017 = vpop.xlane.xlu0 %1016
    %v1018 = vsel %vm113, %v1014, 0.0
    %1019 = vadd.xlane.f32.xlu0 %v1018
    %v1020 = vpop.xlane.xlu0 %1019
    %v1021 = vmul.f32 %v1017, %v120
    %v1022 = vmul.f32 %v1020, %v120
    %v1023 = vmul.f32 %v1013, %v1013
    %v1024 = vmul.f32 %v1014, %v1014
    %v1025 = vsel %vm113, %v1023, 0.0
    %1026 = vadd.xlane.f32.xlu0 %v1025
    %v1027 = vpop.xlane.xlu0 %1026
    %v1028 = vsel %vm113, %v1024, 0.0
    %1029 = vadd.xlane.f32.xlu0 %v1028
    %v1030 = vpop.xlane.xlu0 %1029
    %v1031 = vmul.f32 %v1027, %v120
    %v1032 = vmul.f32 %v1030, %v120
    %v1033 = vsub.f32 %v1013, %v1021
    %v1034 = vsub.f32 %v1014, %v1022
    %v1035 = vmul.f32 %v1021, %v1021
    %v1036 = vmul.f32 %v1022, %v1022
    %v1037 = vsub.f32 %v1031, %v1035
    %v1038 = vsub.f32 %v1032, %v1036
    %v1039 = vadd.f32 %v1037, 1e-05
    %v1040 = vadd.f32 %v1038, 1e-05
    %v1041 = vrsqrt.pop %v1039
    %v1042 = vrsqrt.pop %v1040
    %v1043 = vmul.f32 %v1033, %v1041
    %v1044 = vmul.f32 %v1034, %v1042
    %v1045 = vlaneseq
    %v1046 = vshrl.u32 %v1045, 7
    %v1047 = vsub.s32 0, %v1046
    %v1048 = vrot.slane %v279, %v1047
    %v1049 = vmul.f32 %v1043, %v1048
    %v1050 = vmul.f32 %v1044, %v1048
    %v1051 = vlaneseq
    %v1052 = vshrl.u32 %v1051, 7
    %v1053 = vsub.s32 0, %v1052
    %v1054 = vrot.slane %v280, %v1053
    %v1055 = vadd.f32 %v1049, %v1054
    %v1056 = vadd.f32 %v1050, %v1054
    %v1058 = vsel %vm113, %v1055, 0
    %v1061 = vsel %vm113, %v1056, 0
    %1063 = vmatprep.subr.mxu0 0.0
    %1064 = vmatpush1.msra.mxu0 %v257
    %1065 = vmatprep.subr.mxu0 0.0
    %1066 = vmatpush1.msra.mxu0 %v258
    %1067 = vmatprep.subr.mxu0 0.0
    %1068 = vmatpush1.msra.mxu0 %v259
    %1069 = vmatprep.subr.mxu0 0.0
    %1070 = vmatpush1.msra.mxu0 %v260
    %1071 = vmatprep.subr.mxu0 0.0
    %1072 = vmatpush1.msra.mxu0 0.0
    %1073 = vmatprep.subr.mxu0 0.0
    %1074 = vmatpush1.msra.mxu0 0.0
    %1075 = vmatprep.subr.mxu0 0.0
    %1076 = vmatpush1.msra.mxu0 0.0
    %1077 = vmatprep.subr.mxu0 0.0
    %1078 = vmatpush1.msra.mxu0 0.0
    %1079 = vmatprep.subr.mxu0 0.0
    %1080 = vmatpush1.msra.mxu0 0.0
    %1081 = vmatprep.subr.mxu0 0.0
    %1082 = vmatpush1.msra.mxu0 0.0
    %1083 = vmatprep.subr.mxu0 0.0
    %1084 = vmatpush1.msra.mxu0 0.0
    %1085 = vmatprep.subr.mxu0 0.0
    %1086 = vmatpush1.msra.mxu0 0.0
    %1087 = vmatprep.subr.mxu0 0.0
    %1088 = vmatpush1.msra.mxu0 0.0
    %1089 = vmatprep.subr.mxu0 0.0
    %1090 = vmatpush1.msra.mxu0 0.0
    %1091 = vmatprep.subr.mxu0 0.0
    %1092 = vmatpush1.msra.mxu0 0.0
    %1093 = vmatprep.subr.mxu0 0.0
    %1094 = vmatpush1.msra.mxu0 0.0
    %1095 = vmatprep.subr.mxu0 0.0
    %1096 = vmatpush1.msra.mxu0 0.0
    %1097 = vmatprep.subr.mxu0 0.0
    %1098 = vmatpush1.msra.mxu0 0.0
    %1099 = vmatprep.subr.mxu0 0.0
    %1100 = vmatpush1.msra.mxu0 0.0
    %1101 = vmatprep.subr.mxu0 0.0
    %1102 = vmatpush1.msra.mxu0 0.0
    %1103 = vmatprep.subr.mxu0 0.0
    %1104 = vmatpush1.msra.mxu0 0.0
    %1105 = vmatprep.subr.mxu0 0.0
    %1106 = vmatpush1.msra.mxu0 0.0
    %1107 = vmatprep.subr.mxu0 0.0
    %1108 = vmatpush1.msra.mxu0 0.0
    %1109 = vmatprep.subr.mxu0 0.0
    %1110 = vmatpush1.msra.mxu0 0.0
    %1111 = vmatprep.subr.mxu0 0.0
    %1112 = vmatpush1.msra.mxu0 0.0
    %1113 = vmatprep.subr.mxu0 0.0
    %1114 = vmatpush1.msra.mxu0 0.0
    %1115 = vmatprep.subr.mxu0 0.0
    %1116 = vmatpush1.msra.mxu0 0.0
    %1117 = vmatprep.subr.mxu0 0.0
    %1118 = vmatpush1.msra.mxu0 0.0
    %1119 = vmatprep.subr.mxu0 0.0
    %1120 = vmatpush1.msra.mxu0 0.0
    %1121 = vmatprep.subr.mxu0 0.0
    %1122 = vmatpush1.msra.mxu0 0.0
    %1123 = vmatprep.subr.mxu0 0.0
    %1124 = vmatpush1.msra.mxu0 0.0
    %1125 = vmatprep.subr.mxu0 0.0
    %1126 = vmatpush1.msra.mxu0 0.0
    %1127 = vmatprep.mubr.f32.mxu0 0.0
    %1128 = vmatmul.mubr.f32.gmra.mrb[0].mxu0 %v1058
    %v1129 = vpop.f32.mrb[0].mxu0
    %v1130 = vadd.f32 0.0, %v1129
    %v1131 = vpop.f32.mrb[0].mxu0
    %1132 = vmatprep.mubr.f32.mxu0 0.0
    %1133 = vmatmul.mubr.f32.gmra.mrb[0].mxu0 %v1061
    %v1134 = vpop.f32.mrb[0].mxu0
    %v1135 = vadd.f32 0.0, %v1134
    %v1136 = vpop.f32.mrb[0].mxu0
    %1137 = vdwg.mxu0
    %1140 = vrot.lane.b32.xlu0 %v1130, 120
    %v1141 = vpop.permute.xlu0 %1140
    %1142 = vrot.lane.b32.xlu0 %v1135, 120
    %v1143 = vpop.permute.xlu0 %1142
    %1144 = vrot.lane.b32.xlu0 %v1130, 112
    %v1145 = vpop.permute.xlu0 %1144
    %1146 = vrot.lane.b32.xlu0 %v1135, 112
    %v1147 = vpop.permute.xlu0 %1146
    %1148 = vrot.lane.b32.xlu0 %v1130, 104
    %v1149 = vpop.permute.xlu0 %1148
    %1150 = vrot.lane.b32.xlu0 %v1135, 104
    %v1151 = vpop.permute.xlu0 %1150
    %1152 = vrot.lane.b32.xlu0 %v1130, 96
    %v1153 = vpop.permute.xlu0 %1152
    %1154 = vrot.lane.b32.xlu0 %v1135, 96
    %v1155 = vpop.permute.xlu0 %1154
    %1156 = vrot.lane.b32.xlu0 %v1141, 96
    %v1157 = vpop.permute.xlu0 %1156
    %1158 = vrot.lane.b32.xlu0 %v1143, 96
    %v1159 = vpop.permute.xlu0 %1158
    %1160 = vrot.lane.b32.xlu0 %v1145, 96
    %v1161 = vpop.permute.xlu0 %1160
    %1162 = vrot.lane.b32.xlu0 %v1147, 96
    %v1163 = vpop.permute.xlu0 %1162
    %1164 = vrot.lane.b32.xlu0 %v1149, 96
    %v1165 = vpop.permute.xlu0 %1164
    %1166 = vrot.lane.b32.xlu0 %v1151, 96
    %v1167 = vpop.permute.xlu0 %1166
    %v1168 = vsel %vm500, %v1130, 0
    %v1170 = vsel %vm500, %v1135, 0
    %v1172 = vsel %vm500, %v1141, 0
    %v1174 = vsel %vm500, %v1143, 0
    %v1176 = vsel %vm500, %v1145, 0
    %v1178 = vsel %vm500, %v1147, 0
    %v1180 = vsel %vm500, %v1149, 0
    %v1182 = vsel %vm500, %v1151, 0
    %v1184 = vsel %vm500, %v1153, 0
    %v1186 = vsel %vm500, %v1155, 0
    %v1188 = vsel %vm500, %v1157, 0
    %v1190 = vsel %vm500, %v1159, 0
    %v1192 = vsel %vm500, %v1161, 0
    %v1194 = vsel %vm500, %v1163, 0
    %v1196 = vsel %vm500, %v1165, 0
    %v1198 = vsel %vm500, %v1167, 0
    %1200 = vmatprep.subr.mxu0 0.0
    %1201 = vmatpush1.xpose.msra.mxu0 %v1184
    %1202 = vmatprep.subr.mxu0 0.0
    %1203 = vmatpush1.xpose.msra.mxu0 %v1186
    %1204 = vmatprep.subr.mxu0 0.0
    %1205 = vmatpush1.xpose.msra.mxu0 %v1188
    %1206 = vmatprep.subr.mxu0 0.0
    %1207 = vmatpush1.xpose.msra.mxu0 %v1190
    %1208 = vmatprep.subr.mxu0 0.0
    %1209 = vmatpush1.xpose.msra.mxu0 %v1192
    %1210 = vmatprep.subr.mxu0 0.0
    %1211 = vmatpush1.xpose.msra.mxu0 %v1194
    %1212 = vmatprep.subr.mxu0 0.0
    %1213 = vmatpush1.xpose.msra.mxu0 %v1196
    %1214 = vmatprep.subr.mxu0 0.0
    %1215 = vmatpush1.xpose.msra.mxu0 %v1198
    %1216 = vmatprep.subr.mxu0 0.0
    %1217 = vmatpush1.xpose.msra.mxu0 0.0
    %1218 = vmatprep.subr.mxu0 0.0
    %1219 = vmatpush1.xpose.msra.mxu0 0.0
    %1220 = vmatprep.subr.mxu0 0.0
    %1221 = vmatpush1.xpose.msra.mxu0 0.0
    %1222 = vmatprep.subr.mxu0 0.0
    %1223 = vmatpush1.xpose.msra.mxu0 0.0
    %1224 = vmatprep.subr.mxu0 0.0
    %1225 = vmatpush1.xpose.msra.mxu0 0.0
    %1226 = vmatprep.subr.mxu0 0.0
    %1227 = vmatpush1.xpose.msra.mxu0 0.0
    %1228 = vmatprep.subr.mxu0 0.0
    %1229 = vmatpush1.xpose.msra.mxu0 0.0
    %1230 = vmatprep.subr.mxu0 0.0
    %1231 = vmatpush1.xpose.msra.mxu0 0.0
    %1232 = vmatprep.subr.mxu0 0.0
    %1233 = vmatpush1.xpose.msra.mxu0 0.0
    %1234 = vmatprep.subr.mxu0 0.0
    %1235 = vmatpush1.xpose.msra.mxu0 0.0
    %1236 = vmatprep.subr.mxu0 0.0
    %1237 = vmatpush1.xpose.msra.mxu0 0.0
    %1238 = vmatprep.subr.mxu0 0.0
    %1239 = vmatpush1.xpose.msra.mxu0 0.0
    %1240 = vmatprep.subr.mxu0 0.0
    %1241 = vmatpush1.xpose.msra.mxu0 0.0
    %1242 = vmatprep.subr.mxu0 0.0
    %1243 = vmatpush1.xpose.msra.mxu0 0.0
    %1244 = vmatprep.subr.mxu0 0.0
    %1245 = vmatpush1.xpose.msra.mxu0 0.0
    %1246 = vmatprep.subr.mxu0 0.0
    %1247 = vmatpush1.xpose.msra.mxu0 0.0
    %1248 = vmatprep.subr.mxu0 0.0
    %1249 = vmatpush1.xpose.msra.mxu0 0.0
    %1250 = vmatprep.subr.mxu0 0.0
    %1251 = vmatpush1.xpose.msra.mxu0 0.0
    %1252 = vmatprep.subr.mxu0 0.0
    %1253 = vmatpush1.xpose.msra.mxu0 0.0
    %1254 = vmatprep.subr.mxu0 0.0
    %1255 = vmatpush1.xpose.msra.mxu0 0.0
    %1256 = vmatprep.subr.mxu0 0.0
    %1257 = vmatpush1.xpose.msra.mxu0 0.0
    %1258 = vmatprep.subr.mxu0 0.0
    %1259 = vmatpush1.xpose.msra.mxu0 0.0
    %1260 = vmatprep.subr.mxu0 0.0
    %1261 = vmatpush1.xpose.msra.mxu0 0.0
    %1262 = vmatprep.subr.mxu0 0.0
    %1263 = vmatpush1.xpose.msra.mxu0 0.0
    %1264 = vmatprep.mubr.f32.mxu0 0.0
    %1265 = vmatmul.mubr.f32.gmra.mrb[0].mxu0 %v1168
    %v1266 = vpop.f32.mrb[0].mxu0
    %v1267 = vadd.f32 0.0, %v1266
    %v1268 = vpop.f32.mrb[0].mxu0
    %1269 = vmatprep.mubr.f32.mxu0 0.0
    %1270 = vmatmul.mubr.f32.gmra.mrb[0].mxu0 %v1170
    %v1271 = vpop.f32.mrb[0].mxu0
    %v1272 = vadd.f32 0.0, %v1271
    %v1273 = vpop.f32.mrb[0].mxu0
    %1274 = vmatprep.mubr.f32.mxu0 0.0
    %1275 = vmatmul.mubr.f32.gmra.mrb[0].mxu0 %v1172
    %v1276 = vpop.f32.mrb[0].mxu0
    %v1277 = vadd.f32 0.0, %v1276
    %v1278 = vpop.f32.mrb[0].mxu0
    %1279 = vmatprep.mubr.f32.mxu0 0.0
    %1280 = vmatmul.mubr.f32.gmra.mrb[0].mxu0 %v1174
    %v1281 = vpop.f32.mrb[0].mxu0
    %v1282 = vadd.f32 0.0, %v1281
    %v1283 = vpop.f32.mrb[0].mxu0
    %1284 = vmatprep.mubr.f32.mxu0 0.0
    %1285 = vmatmul.mubr.f32.gmra.mrb[0].mxu0 %v1176
    %v1286 = vpop.f32.mrb[0].mxu0
    %v1287 = vadd.f32 0.0, %v1286
    %v1288 = vpop.f32.mrb[0].mxu0
    %1289 = vmatprep.mubr.f32.mxu0 0.0
    %1290 = vmatmul.mubr.f32.gmra.mrb[0].mxu0 %v1178
    %v1291 = vpop.f32.mrb[0].mxu0
    %v1292 = vadd.f32 0.0, %v1291
    %v1293 = vpop.f32.mrb[0].mxu0
    %1294 = vmatprep.mubr.f32.mxu0 0.0
    %1295 = vmatmul.mubr.f32.gmra.mrb[0].mxu0 %v1180
    %v1296 = vpop.f32.mrb[0].mxu0
    %v1297 = vadd.f32 0.0, %v1296
    %v1298 = vpop.f32.mrb[0].mxu0
    %1299 = vmatprep.mubr.f32.mxu0 0.0
    %1300 = vmatmul.mubr.f32.gmra.mrb[0].mxu0 %v1182
    %v1301 = vpop.f32.mrb[0].mxu0
    %v1302 = vadd.f32 0.0, %v1301
    %v1303 = vpop.f32.mrb[0].mxu0
    %1304 = vdwg.mxu0
    %v1305 = vmul.f32 %v1267, 0.35355338
    %v1306 = vmul.f32 %v1272, 0.35355338
    %v1307 = vmul.f32 %v1277, 0.35355338
    %v1308 = vmul.f32 %v1282, 0.35355338
    %v1309 = vmul.f32 %v1287, 0.35355338
    %v1310 = vmul.f32 %v1292, 0.35355338
    %v1311 = vmul.f32 %v1297, 0.35355338
    %v1312 = vmul.f32 %v1302, 0.35355338
    %v1313 = vadd.f32 %v1305, %v101
    %v1314 = vadd.f32 %v1306, %v102
    %v1315 = vadd.f32 %v1307, %v103
    %v1316 = vadd.f32 %v1308, %v104
    %v1317 = vadd.f32 %v1309, %v105
    %v1318 = vadd.f32 %v1310, %v106
    %v1319 = vadd.f32 %v1311, %v107
    %v1320 = vadd.f32 %v1312, %v108
    %v1321 = vsel %vm654, %v1313, -inf
    %1322 = vmax.xlane.f32.xlu0 %v1321
    %v1323 = vpop.xlane.xlu0 %1322
    %v1324 = vsel %vm654, %v1314, -inf
    %1325 = vmax.xlane.f32.xlu0 %v1324
    %v1326 = vpop.xlane.xlu0 %1325
    %v1327 = vsel %vm654, %v1315, -inf
    %1328 = vmax.xlane.f32.xlu0 %v1327
    %v1329 = vpop.xlane.xlu0 %1328
    %v1330 = vsel %vm654, %v1316, -inf
    %1331 = vmax.xlane.f32.xlu0 %v1330
    %v1332 = vpop.xlane.xlu0 %1331
    %v1333 = vsel %vm654, %v1317, -inf
    %1334 = vmax.xlane.f32.xlu0 %v1333
    %v1335 = vpop.xlane.xlu0 %1334
    %v1336 = vsel %vm654, %v1318, -inf
    %1337 = vmax.xlane.f32.xlu0 %v1336
    %v1338 = vpop.xlane.xlu0 %1337
    %v1339 = vsel %vm654, %v1319, -inf
    %1340 = vmax.xlane.f32.xlu0 %v1339
    %v1341 = vpop.xlane.xlu0 %1340
    %v1342 = vsel %vm654, %v1320, -inf
    %1343 = vmax.xlane.f32.xlu0 %v1342
    %v1344 = vpop.xlane.xlu0 %1343
    %v1345 = vsub.f32 %v1313, %v1323
    %v1346 = vsub.f32 %v1314, %v1326
    %v1347 = vsub.f32 %v1315, %v1329
    %v1348 = vsub.f32 %v1316, %v1332
    %v1349 = vsub.f32 %v1317, %v1335
    %v1350 = vsub.f32 %v1318, %v1338
    %v1351 = vsub.f32 %v1319, %v1341
    %v1352 = vsub.f32 %v1320, %v1344
    %v1353 = vmul.f32 %v1345, 1.442695
    %v1354 = vpow.pop %v1353
    %v1355 = vmul.f32 %v1346, 1.442695
    %v1356 = vpow.pop %v1355
    %v1357 = vmul.f32 %v1347, 1.442695
    %v1358 = vpow.pop %v1357
    %v1359 = vmul.f32 %v1348, 1.442695
    %v1360 = vpow.pop %v1359
    %v1361 = vmul.f32 %v1349, 1.442695
    %v1362 = vpow.pop %v1361
    %v1363 = vmul.f32 %v1350, 1.442695
    %v1364 = vpow.pop %v1363
    %v1365 = vmul.f32 %v1351, 1.442695
    %v1366 = vpow.pop %v1365
    %v1367 = vmul.f32 %v1352, 1.442695
    %v1368 = vpow.pop %v1367
    %v1369 = vsel %vm654, %v1354, 0.0
    %1370 = vadd.xlane.f32.xlu0 %v1369
    %v1371 = vpop.xlane.xlu0 %1370
    %v1372 = vsel %vm654, %v1356, 0.0
    %1373 = vadd.xlane.f32.xlu0 %v1372
    %v1374 = vpop.xlane.xlu0 %1373
    %v1375 = vsel %vm654, %v1358, 0.0
    %1376 = vadd.xlane.f32.xlu0 %v1375
    %v1377 = vpop.xlane.xlu0 %1376
    %v1378 = vsel %vm654, %v1360, 0.0
    %1379 = vadd.xlane.f32.xlu0 %v1378
    %v1380 = vpop.xlane.xlu0 %1379
    %v1381 = vsel %vm654, %v1362, 0.0
    %1382 = vadd.xlane.f32.xlu0 %v1381
    %v1383 = vpop.xlane.xlu0 %1382
    %v1384 = vsel %vm654, %v1364, 0.0
    %1385 = vadd.xlane.f32.xlu0 %v1384
    %v1386 = vpop.xlane.xlu0 %1385
    %v1387 = vsel %vm654, %v1366, 0.0
    %1388 = vadd.xlane.f32.xlu0 %v1387
    %v1389 = vpop.xlane.xlu0 %1388
    %v1390 = vsel %vm654, %v1368, 0.0
    %1391 = vadd.xlane.f32.xlu0 %v1390
    %v1392 = vpop.xlane.xlu0 %1391
    %v1393 = vrcp.pop %v1371
    %v1394 = vrcp.pop %v1374
    %v1395 = vrcp.pop %v1377
    %v1396 = vrcp.pop %v1380
    %v1397 = vrcp.pop %v1383
    %v1398 = vrcp.pop %v1386
    %v1399 = vrcp.pop %v1389
    %v1400 = vrcp.pop %v1392
    %v1401 = vmul.f32 %v1354, %v1393
    %v1402 = vmul.f32 %v1356, %v1394
    %v1403 = vmul.f32 %v1358, %v1395
    %v1404 = vmul.f32 %v1360, %v1396
    %v1405 = vmul.f32 %v1362, %v1397
    %v1406 = vmul.f32 %v1364, %v1398
    %v1407 = vmul.f32 %v1366, %v1399
    %v1408 = vmul.f32 %v1368, %v1400
    %1409 = vrot.lane.b32.xlu0 %v1130, 64
    %v1410 = vpop.permute.xlu0 %1409
    %1411 = vrot.lane.b32.xlu0 %v1135, 64
    %v1412 = vpop.permute.xlu0 %1411
    %1413 = vrot.lane.b32.xlu0 %v1141, 64
    %v1414 = vpop.permute.xlu0 %1413
    %1415 = vrot.lane.b32.xlu0 %v1143, 64
    %v1416 = vpop.permute.xlu0 %1415
    %1417 = vrot.lane.b32.xlu0 %v1145, 64
    %v1418 = vpop.permute.xlu0 %1417
    %1419 = vrot.lane.b32.xlu0 %v1147, 64
    %v1420 = vpop.permute.xlu0 %1419
    %1421 = vrot.lane.b32.xlu0 %v1149, 64
    %v1422 = vpop.permute.xlu0 %1421
    %1423 = vrot.lane.b32.xlu0 %v1151, 64
    %v1424 = vpop.permute.xlu0 %1423
    %v1434 = vsel %vm654, %v1401, 0
    %v1437 = vsel %vm654, %v1402, 0
    %v1440 = vsel %vm654, %v1403, 0
    %v1443 = vsel %vm654, %v1404, 0
    %v1446 = vsel %vm654, %v1405, 0
    %v1449 = vsel %vm654, %v1406, 0
    %v1452 = vsel %vm654, %v1407, 0
    %v1455 = vsel %vm654, %v1408, 0
    %1457 = vmatprep.subr.mxu0 0.0
    %1458 = vmatpush1.msra.mxu0 %v1410
    %1459 = vmatprep.subr.mxu0 0.0
    %1460 = vmatpush1.msra.mxu0 %v1412
    %1461 = vmatprep.subr.mxu0 0.0
    %1462 = vmatpush1.msra.mxu0 %v1414
    %1463 = vmatprep.subr.mxu0 0.0
    %1464 = vmatpush1.msra.mxu0 %v1416
    %1465 = vmatprep.subr.mxu0 0.0
    %1466 = vmatpush1.msra.mxu0 %v1418
    %1467 = vmatprep.subr.mxu0 0.0
    %1468 = vmatpush1.msra.mxu0 %v1420
    %1469 = vmatprep.subr.mxu0 0.0
    %1470 = vmatpush1.msra.mxu0 %v1422
    %1471 = vmatprep.subr.mxu0 0.0
    %1472 = vmatpush1.msra.mxu0 %v1424
    %1473 = vmatprep.subr.mxu0 0.0
    %1474 = vmatpush1.msra.mxu0 0.0
    %1475 = vmatprep.subr.mxu0 0.0
    %1476 = vmatpush1.msra.mxu0 0.0
    %1477 = vmatprep.subr.mxu0 0.0
    %1478 = vmatpush1.msra.mxu0 0.0
    %1479 = vmatprep.subr.mxu0 0.0
    %1480 = vmatpush1.msra.mxu0 0.0
    %1481 = vmatprep.subr.mxu0 0.0
    %1482 = vmatpush1.msra.mxu0 0.0
    %1483 = vmatprep.subr.mxu0 0.0
    %1484 = vmatpush1.msra.mxu0 0.0
    %1485 = vmatprep.subr.mxu0 0.0
    %1486 = vmatpush1.msra.mxu0 0.0
    %1487 = vmatprep.subr.mxu0 0.0
    %1488 = vmatpush1.msra.mxu0 0.0
    %1489 = vmatprep.subr.mxu0 0.0
    %1490 = vmatpush1.msra.mxu0 0.0
    %1491 = vmatprep.subr.mxu0 0.0
    %1492 = vmatpush1.msra.mxu0 0.0
    %1493 = vmatprep.subr.mxu0 0.0
    %1494 = vmatpush1.msra.mxu0 0.0
    %1495 = vmatprep.subr.mxu0 0.0
    %1496 = vmatpush1.msra.mxu0 0.0
    %1497 = vmatprep.subr.mxu0 0.0
    %1498 = vmatpush1.msra.mxu0 0.0
    %1499 = vmatprep.subr.mxu0 0.0
    %1500 = vmatpush1.msra.mxu0 0.0
    %1501 = vmatprep.subr.mxu0 0.0
    %1502 = vmatpush1.msra.mxu0 0.0
    %1503 = vmatprep.subr.mxu0 0.0
    %1504 = vmatpush1.msra.mxu0 0.0
    %1505 = vmatprep.subr.mxu0 0.0
    %1506 = vmatpush1.msra.mxu0 0.0
    %1507 = vmatprep.subr.mxu0 0.0
    %1508 = vmatpush1.msra.mxu0 0.0
    %1509 = vmatprep.subr.mxu0 0.0
    %1510 = vmatpush1.msra.mxu0 0.0
    %1511 = vmatprep.subr.mxu0 0.0
    %1512 = vmatpush1.msra.mxu0 0.0
    %1513 = vmatprep.subr.mxu0 0.0
    %1514 = vmatpush1.msra.mxu0 0.0
    %1515 = vmatprep.subr.mxu0 0.0
    %1516 = vmatpush1.msra.mxu0 0.0
    %1517 = vmatprep.subr.mxu0 0.0
    %1518 = vmatpush1.msra.mxu0 0.0
    %1519 = vmatprep.subr.mxu0 0.0
    %1520 = vmatpush1.msra.mxu0 0.0
    %1521 = vmatprep.mubr.f32.mxu0 0.0
    %1522 = vmatmul.mubr.f32.gmra.mrb[0].mxu0 %v1434
    %v1523 = vpop.f32.mrb[0].mxu0
    %v1524 = vadd.f32 0.0, %v1523
    %v1525 = vpop.f32.mrb[0].mxu0
    %1526 = vmatprep.mubr.f32.mxu0 0.0
    %1527 = vmatmul.mubr.f32.gmra.mrb[0].mxu0 %v1437
    %v1528 = vpop.f32.mrb[0].mxu0
    %v1529 = vadd.f32 0.0, %v1528
    %v1530 = vpop.f32.mrb[0].mxu0
    %1531 = vmatprep.mubr.f32.mxu0 0.0
    %1532 = vmatmul.mubr.f32.gmra.mrb[0].mxu0 %v1440
    %v1533 = vpop.f32.mrb[0].mxu0
    %v1534 = vadd.f32 0.0, %v1533
    %v1535 = vpop.f32.mrb[0].mxu0
    %1536 = vmatprep.mubr.f32.mxu0 0.0
    %1537 = vmatmul.mubr.f32.gmra.mrb[0].mxu0 %v1443
    %v1538 = vpop.f32.mrb[0].mxu0
    %v1539 = vadd.f32 0.0, %v1538
    %v1540 = vpop.f32.mrb[0].mxu0
    %1541 = vmatprep.mubr.f32.mxu0 0.0
    %1542 = vmatmul.mubr.f32.gmra.mrb[0].mxu0 %v1446
    %v1543 = vpop.f32.mrb[0].mxu0
    %v1544 = vadd.f32 0.0, %v1543
    %v1545 = vpop.f32.mrb[0].mxu0
    %1546 = vmatprep.mubr.f32.mxu0 0.0
    %1547 = vmatmul.mubr.f32.gmra.mrb[0].mxu0 %v1449
    %v1548 = vpop.f32.mrb[0].mxu0
    %v1549 = vadd.f32 0.0, %v1548
    %v1550 = vpop.f32.mrb[0].mxu0
    %1551 = vmatprep.mubr.f32.mxu0 0.0
    %1552 = vmatmul.mubr.f32.gmra.mrb[0].mxu0 %v1452
    %v1553 = vpop.f32.mrb[0].mxu0
    %v1554 = vadd.f32 0.0, %v1553
    %v1555 = vpop.f32.mrb[0].mxu0
    %1556 = vmatprep.mubr.f32.mxu0 0.0
    %1557 = vmatmul.mubr.f32.gmra.mrb[0].mxu0 %v1455
    %v1558 = vpop.f32.mrb[0].mxu0
    %v1559 = vadd.f32 0.0, %v1558
    %v1560 = vpop.f32.mrb[0].mxu0
    %1561 = vdwg.mxu0
    %1564 = vrot.lane.b32.xlu0 %v1534, 8
    %v1565 = vpop.permute.xlu0 %1564
    %1566 = vrot.lane.b32.xlu0 %v1539, 8
    %v1567 = vpop.permute.xlu0 %1566
    %1572 = vrot.lane.b32.xlu0 %v1544, 16
    %v1573 = vpop.permute.xlu0 %1572
    %1574 = vrot.lane.b32.xlu0 %v1549, 16
    %v1575 = vpop.permute.xlu0 %1574
    %1580 = vrot.lane.b32.xlu0 %v1554, 24
    %v1581 = vpop.permute.xlu0 %1580
    %1582 = vrot.lane.b32.xlu0 %v1559, 24
    %v1583 = vpop.permute.xlu0 %1582
    %v1586 = vsel %vm500, %v1524, %v1565
    %v1587 = vsel %vm500, %v1529, %v1567
    %v1588 = vsel %vm922, %v1586, %v1573
    %v1589 = vsel %vm922, %v1587, %v1575
    %v1590 = vsel %vm925, %v1588, %v1581
    %v1591 = vsel %vm925, %v1589, %v1583
    %v1592 = vlaneseq
    %v1593 = vshrl.u32 %v1592, 7
    %v1594 = vsub.s32 0, %v1593
    %v1595 = vrot.slane %v284, %v1594
    %v1597 = vsel %vm113, %v1590, 0
    %v1600 = vsel %vm113, %v1591, 0
    %1602 = vmatprep.subr.mxu0 0.0
    %1603 = vmatpush1.msra.mxu0 %v261
    %1604 = vmatprep.subr.mxu0 0.0
    %1605 = vmatpush1.msra.mxu0 %v262
    %1606 = vmatprep.subr.mxu0 0.0
    %1607 = vmatpush1.msra.mxu0 %v263
    %1608 = vmatprep.subr.mxu0 0.0
    %1609 = vmatpush1.msra.mxu0 %v264
    %1610 = vmatprep.subr.mxu0 0.0
    %1611 = vmatpush1.msra.mxu0 0.0
    %1612 = vmatprep.subr.mxu0 0.0
    %1613 = vmatpush1.msra.mxu0 0.0
    %1614 = vmatprep.subr.mxu0 0.0
    %1615 = vmatpush1.msra.mxu0 0.0
    %1616 = vmatprep.subr.mxu0 0.0
    %1617 = vmatpush1.msra.mxu0 0.0
    %1618 = vmatprep.subr.mxu0 0.0
    %1619 = vmatpush1.msra.mxu0 0.0
    %1620 = vmatprep.subr.mxu0 0.0
    %1621 = vmatpush1.msra.mxu0 0.0
    %1622 = vmatprep.subr.mxu0 0.0
    %1623 = vmatpush1.msra.mxu0 0.0
    %1624 = vmatprep.subr.mxu0 0.0
    %1625 = vmatpush1.msra.mxu0 0.0
    %1626 = vmatprep.subr.mxu0 0.0
    %1627 = vmatpush1.msra.mxu0 0.0
    %1628 = vmatprep.subr.mxu0 0.0
    %1629 = vmatpush1.msra.mxu0 0.0
    %1630 = vmatprep.subr.mxu0 0.0
    %1631 = vmatpush1.msra.mxu0 0.0
    %1632 = vmatprep.subr.mxu0 0.0
    %1633 = vmatpush1.msra.mxu0 0.0
    %1634 = vmatprep.subr.mxu0 0.0
    %1635 = vmatpush1.msra.mxu0 0.0
    %1636 = vmatprep.subr.mxu0 0.0
    %1637 = vmatpush1.msra.mxu0 0.0
    %1638 = vmatprep.subr.mxu0 0.0
    %1639 = vmatpush1.msra.mxu0 0.0
    %1640 = vmatprep.subr.mxu0 0.0
    %1641 = vmatpush1.msra.mxu0 0.0
    %1642 = vmatprep.subr.mxu0 0.0
    %1643 = vmatpush1.msra.mxu0 0.0
    %1644 = vmatprep.subr.mxu0 0.0
    %1645 = vmatpush1.msra.mxu0 0.0
    %1646 = vmatprep.subr.mxu0 0.0
    %1647 = vmatpush1.msra.mxu0 0.0
    %1648 = vmatprep.subr.mxu0 0.0
    %1649 = vmatpush1.msra.mxu0 0.0
    %1650 = vmatprep.subr.mxu0 0.0
    %1651 = vmatpush1.msra.mxu0 0.0
    %1652 = vmatprep.subr.mxu0 0.0
    %1653 = vmatpush1.msra.mxu0 0.0
    %1654 = vmatprep.subr.mxu0 0.0
    %1655 = vmatpush1.msra.mxu0 0.0
    %1656 = vmatprep.subr.mxu0 0.0
    %1657 = vmatpush1.msra.mxu0 0.0
    %1658 = vmatprep.subr.mxu0 0.0
    %1659 = vmatpush1.msra.mxu0 0.0
    %1660 = vmatprep.subr.mxu0 0.0
    %1661 = vmatpush1.msra.mxu0 0.0
    %1662 = vmatprep.subr.mxu0 0.0
    %1663 = vmatpush1.msra.mxu0 0.0
    %1664 = vmatprep.subr.mxu0 0.0
    %1665 = vmatpush1.msra.mxu0 0.0
    %1666 = vmatprep.mubr.f32.mxu0 0.0
    %1667 = vmatmul.mubr.f32.gmra.mrb[0].mxu0 %v1597
    %v1668 = vpop.f32.mrb[0].mxu0
    %v1669 = vadd.f32 %v1595, %v1668
    %v1670 = vpop.f32.mrb[0].mxu0
    %1671 = vmatprep.mubr.f32.mxu0 0.0
    %1672 = vmatmul.mubr.f32.gmra.mrb[0].mxu0 %v1600
    %v1673 = vpop.f32.mrb[0].mxu0
    %v1674 = vadd.f32 %v1595, %v1673
    %v1675 = vpop.f32.mrb[0].mxu0
    %1676 = vdwg.mxu0
    %v1677 = vadd.f32 %v1669, %v1055
    %v1678 = vadd.f32 %v1674, %v1056
    %v1679 = vsel %vm113, %v1677, 0.0
    %1680 = vadd.xlane.f32.xlu0 %v1679
    %v1681 = vpop.xlane.xlu0 %1680
    %v1682 = vsel %vm113, %v1678, 0.0
    %1683 = vadd.xlane.f32.xlu0 %v1682
    %v1684 = vpop.xlane.xlu0 %1683
    %v1685 = vmul.f32 %v1681, %v120
    %v1686 = vmul.f32 %v1684, %v120
    %v1687 = vmul.f32 %v1677, %v1677
    %v1688 = vmul.f32 %v1678, %v1678
    %v1689 = vsel %vm113, %v1687, 0.0
    %1690 = vadd.xlane.f32.xlu0 %v1689
    %v1691 = vpop.xlane.xlu0 %1690
    %v1692 = vsel %vm113, %v1688, 0.0
    %1693 = vadd.xlane.f32.xlu0 %v1692
    %v1694 = vpop.xlane.xlu0 %1693
    %v1695 = vmul.f32 %v1691, %v120
    %v1696 = vmul.f32 %v1694, %v120
    %v1697 = vsub.f32 %v1677, %v1685
    %v1698 = vsub.f32 %v1678, %v1686
    %v1699 = vmul.f32 %v1685, %v1685
    %v1700 = vmul.f32 %v1686, %v1686
    %v1701 = vsub.f32 %v1695, %v1699
    %v1702 = vsub.f32 %v1696, %v1700
    %v1703 = vadd.f32 %v1701, 1e-05
    %v1704 = vadd.f32 %v1702, 1e-05
    %v1705 = vrsqrt.pop %v1703
    %v1706 = vrsqrt.pop %v1704
    %v1707 = vmul.f32 %v1697, %v1705
    %v1708 = vmul.f32 %v1698, %v1706
    %v1709 = vlaneseq
    %v1710 = vshrl.u32 %v1709, 7
    %v1711 = vsub.s32 0, %v1710
    %v1712 = vrot.slane %v281, %v1711
    %v1713 = vmul.f32 %v1707, %v1712
    %v1714 = vmul.f32 %v1708, %v1712
    %v1715 = vlaneseq
    %v1716 = vshrl.u32 %v1715, 7
    %v1717 = vsub.s32 0, %v1716
    %v1718 = vrot.slane %v282, %v1717
    %v1719 = vadd.f32 %v1713, %v1718
    %v1720 = vadd.f32 %v1714, %v1718
    %v1721 = vlaneseq
    %v1722 = vshrl.u32 %v1721, 7
    %v1723 = vsub.s32 0, %v1722
    %v1724 = vrot.slane %v285, %v1723
    %v1726 = vsel %vm113, %v1719, 0
    %v1729 = vsel %vm113, %v1720, 0
    %1731 = vmatprep.subr.mxu0 0.0
    %1732 = vmatpush1.msra.mxu0 %v265
    %1733 = vmatprep.subr.mxu0 0.0
    %1734 = vmatpush1.msra.mxu0 %v266
    %1735 = vmatprep.subr.mxu0 0.0
    %1736 = vmatpush1.msra.mxu0 %v267
    %1737 = vmatprep.subr.mxu0 0.0
    %1738 = vmatpush1.msra.mxu0 %v268
    %1739 = vmatprep.subr.mxu0 0.0
    %1740 = vmatpush1.msra.mxu0 0.0
    %1741 = vmatprep.subr.mxu0 0.0
    %1742 = vmatpush1.msra.mxu0 0.0
    %1743 = vmatprep.subr.mxu0 0.0
    %1744 = vmatpush1.msra.mxu0 0.0
    %1745 = vmatprep.subr.mxu0 0.0
    %1746 = vmatpush1.msra.mxu0 0.0
    %1747 = vmatprep.subr.mxu0 0.0
    %1748 = vmatpush1.msra.mxu0 0.0
    %1749 = vmatprep.subr.mxu0 0.0
    %1750 = vmatpush1.msra.mxu0 0.0
    %1751 = vmatprep.subr.mxu0 0.0
    %1752 = vmatpush1.msra.mxu0 0.0
    %1753 = vmatprep.subr.mxu0 0.0
    %1754 = vmatpush1.msra.mxu0 0.0
    %1755 = vmatprep.subr.mxu0 0.0
    %1756 = vmatpush1.msra.mxu0 0.0
    %1757 = vmatprep.subr.mxu0 0.0
    %1758 = vmatpush1.msra.mxu0 0.0
    %1759 = vmatprep.subr.mxu0 0.0
    %1760 = vmatpush1.msra.mxu0 0.0
    %1761 = vmatprep.subr.mxu0 0.0
    %1762 = vmatpush1.msra.mxu0 0.0
    %1763 = vmatprep.subr.mxu0 0.0
    %1764 = vmatpush1.msra.mxu0 0.0
    %1765 = vmatprep.subr.mxu0 0.0
    %1766 = vmatpush1.msra.mxu0 0.0
    %1767 = vmatprep.subr.mxu0 0.0
    %1768 = vmatpush1.msra.mxu0 0.0
    %1769 = vmatprep.subr.mxu0 0.0
    %1770 = vmatpush1.msra.mxu0 0.0
    %1771 = vmatprep.subr.mxu0 0.0
    %1772 = vmatpush1.msra.mxu0 0.0
    %1773 = vmatprep.subr.mxu0 0.0
    %1774 = vmatpush1.msra.mxu0 0.0
    %1775 = vmatprep.subr.mxu0 0.0
    %1776 = vmatpush1.msra.mxu0 0.0
    %1777 = vmatprep.subr.mxu0 0.0
    %1778 = vmatpush1.msra.mxu0 0.0
    %1779 = vmatprep.subr.mxu0 0.0
    %1780 = vmatpush1.msra.mxu0 0.0
    %1781 = vmatprep.subr.mxu0 0.0
    %1782 = vmatpush1.msra.mxu0 0.0
    %1783 = vmatprep.subr.mxu0 0.0
    %1784 = vmatpush1.msra.mxu0 0.0
    %1785 = vmatprep.subr.mxu0 0.0
    %1786 = vmatpush1.msra.mxu0 0.0
    %1787 = vmatprep.subr.mxu0 0.0
    %1788 = vmatpush1.msra.mxu0 0.0
    %1789 = vmatprep.subr.mxu0 0.0
    %1790 = vmatpush1.msra.mxu0 0.0
    %1791 = vmatprep.subr.mxu0 0.0
    %1792 = vmatpush1.msra.mxu0 0.0
    %1793 = vmatprep.subr.mxu0 0.0
    %1794 = vmatpush1.msra.mxu0 0.0
    %1795 = vmatprep.mubr.f32.mxu0 0.0
    %1796 = vmatmul.mubr.f32.gmra.mrb[0].mxu0 %v1726
    %v1797 = vpop.f32.mrb[0].mxu0
    %v1798 = vadd.f32 %v1724, %v1797
    %v1799 = vpop.f32.mrb[0].mxu0
    %1800 = vmatprep.mubr.f32.mxu0 0.0
    %1801 = vmatmul.mubr.f32.gmra.mrb[0].mxu0 %v1729
    %v1802 = vpop.f32.mrb[0].mxu0
    %v1803 = vadd.f32 %v1724, %v1802
    %v1804 = vpop.f32.mrb[0].mxu0
    %1805 = vdwg.mxu0
    %v1806 = vmul.f32 %v1798, 0.5
    %v1807 = vmul.f32 %v1803, 0.5
    %v1808 = vmul.f32 %v1798, 0.70710677
    %v1809 = vmul.f32 %v1803, 0.70710677
    %v1810 = vand.u32 2147483647, %v1808
    %v1811 = vand.u32 2147483647, %v1809
    %v1812 = vmul.f32 %v1810, 0.3275911
    %v1813 = vmul.f32 %v1811, 0.3275911
    %v1814 = vadd.f32 %v1812, 1.0
    %v1815 = vadd.f32 %v1813, 1.0
    %v1816 = vrcp.pop %v1814
    %v1817 = vmul.f32 1.0, %v1816
    %v1818 = vrcp.pop %v1815
    %v1819 = vmul.f32 1.0, %v1818
    %v1820 = vmul.f32 %v1817, 1.0614054
    %v1821 = vmul.f32 %v1819, 1.0614054
    %v1822 = vadd.f32 %v1820, -1.4531521
    %v1823 = vadd.f32 %v1821, -1.4531521
    %v1824 = vmul.f32 %v1822, %v1817
    %v1825 = vmul.f32 %v1823, %v1819
    %v1826 = vadd.f32 %v1824, 1.4214138
    %v1827 = vadd.f32 %v1825, 1.4214138
    %v1828 = vmul.f32 %v1826, %v1817
    %v1829 = vmul.f32 %v1827, %v1819
    %v1830 = vadd.f32 %v1828, -0.28449672
    %v1831 = vadd.f32 %v1829, -0.28449672
    %v1832 = vmul.f32 %v1830, %v1817
    %v1833 = vmul.f32 %v1831, %v1819
    %v1834 = vadd.f32 %v1832, 0.2548296
    %v1835 = vadd.f32 %v1833, 0.2548296
    %v1836 = vmul.f32 %v1834, %v1817
    %v1837 = vmul.f32 %v1835, %v1819
    %v1838 = vsub.f32 0.0, %v1810
    %v1839 = vsub.f32 0.0, %v1811
    %v1840 = vmul.f32 %v1838, %v1810
    %v1841 = vmul.f32 %v1839, %v1811
    %v1842 = vmul.f32 %v1840, 1.442695
    %v1843 = vpow.pop %v1842
    %v1844 = vmul.f32 %v1841, 1.442695
    %v1845 = vpow.pop %v1844
    %v1846 = vmul.f32 %v1836, %v1843
    %v1847 = vmul.f32 %v1837, %v1845
    %v1848 = vsub.f32 1.0, %v1846
    %v1849 = vsub.f32 1.0, %v1847
    %vm1850 = vcmp.ge.f32.partialorder %v1808, 0.0
    %vm1851 = vcmp.ge.f32.partialorder %v1809, 0.0
    %v1852 = vsub.f32 0.0, %v1848
    %v1853 = vsub.f32 0.0, %v1849
    %v1854 = vsel %vm1850, %v1848, %v1852
    %v1855 = vsel %vm1851, %v1849, %v1853
    %v1856 = vadd.f32 %v1854, 1.0
    %v1857 = vadd.f32 %v1855, 1.0
    %v1858 = vmul.f32 %v1806, %v1856
    %v1859 = vmul.f32 %v1807, %v1857
    %v1860 = vlaneseq
    %v1861 = vshrl.u32 %v1860, 7
    %v1862 = vsub.s32 0, %v1861
    %v1863 = vrot.slane %v286, %v1862
    %v1865 = vsel %vm654, %v1858, 0
    %v1868 = vsel %vm654, %v1859, 0
    %1870 = vmatprep.subr.mxu0 0.0
    %1871 = vmatpush1.msra.mxu0 %v269
    %1872 = vmatprep.subr.mxu0 0.0
    %1873 = vmatpush1.msra.mxu0 %v270
    %1874 = vmatprep.subr.mxu0 0.0
    %1875 = vmatpush1.msra.mxu0 %v271
    %1876 = vmatprep.subr.mxu0 0.0
    %1877 = vmatpush1.msra.mxu0 %v272
    %1878 = vmatprep.subr.mxu0 0.0
    %1879 = vmatpush1.msra.mxu0 %v273
    %1880 = vmatprep.subr.mxu0 0.0
    %1881 = vmatpush1.msra.mxu0 %v274
    %1882 = vmatprep.subr.mxu0 0.0
    %1883 = vmatpush1.msra.mxu0 %v275
    %1884 = vmatprep.subr.mxu0 0.0
    %1885 = vmatpush1.msra.mxu0 %v276
    %1886 = vmatprep.subr.mxu0 0.0
    %1887 = vmatpush1.msra.mxu0 0.0
    %1888 = vmatprep.subr.mxu0 0.0
    %1889 = vmatpush1.msra.mxu0 0.0
    %1890 = vmatprep.subr.mxu0 0.0
    %1891 = vmatpush1.msra.mxu0 0.0
    %1892 = vmatprep.subr.mxu0 0.0
    %1893 = vmatpush1.msra.mxu0 0.0
    %1894 = vmatprep.subr.mxu0 0.0
    %1895 = vmatpush1.msra.mxu0 0.0
    %1896 = vmatprep.subr.mxu0 0.0
    %1897 = vmatpush1.msra.mxu0 0.0
    %1898 = vmatprep.subr.mxu0 0.0
    %1899 = vmatpush1.msra.mxu0 0.0
    %1900 = vmatprep.subr.mxu0 0.0
    %1901 = vmatpush1.msra.mxu0 0.0
    %1902 = vmatprep.subr.mxu0 0.0
    %1903 = vmatpush1.msra.mxu0 0.0
    %1904 = vmatprep.subr.mxu0 0.0
    %1905 = vmatpush1.msra.mxu0 0.0
    %1906 = vmatprep.subr.mxu0 0.0
    %1907 = vmatpush1.msra.mxu0 0.0
    %1908 = vmatprep.subr.mxu0 0.0
    %1909 = vmatpush1.msra.mxu0 0.0
    %1910 = vmatprep.subr.mxu0 0.0
    %1911 = vmatpush1.msra.mxu0 0.0
    %1912 = vmatprep.subr.mxu0 0.0
    %1913 = vmatpush1.msra.mxu0 0.0
    %1914 = vmatprep.subr.mxu0 0.0
    %1915 = vmatpush1.msra.mxu0 0.0
    %1916 = vmatprep.subr.mxu0 0.0
    %1917 = vmatpush1.msra.mxu0 0.0
    %1918 = vmatprep.subr.mxu0 0.0
    %1919 = vmatpush1.msra.mxu0 0.0
    %1920 = vmatprep.subr.mxu0 0.0
    %1921 = vmatpush1.msra.mxu0 0.0
    %1922 = vmatprep.subr.mxu0 0.0
    %1923 = vmatpush1.msra.mxu0 0.0
    %1924 = vmatprep.subr.mxu0 0.0
    %1925 = vmatpush1.msra.mxu0 0.0
    %1926 = vmatprep.subr.mxu0 0.0
    %1927 = vmatpush1.msra.mxu0 0.0
    %1928 = vmatprep.subr.mxu0 0.0
    %1929 = vmatpush1.msra.mxu0 0.0
    %1930 = vmatprep.subr.mxu0 0.0
    %1931 = vmatpush1.msra.mxu0 0.0
    %1932 = vmatprep.subr.mxu0 0.0
    %1933 = vmatpush1.msra.mxu0 0.0
    %1934 = vmatprep.mubr.f32.mxu0 0.0
    %1935 = vmatmul.mubr.f32.gmra.mrb[0].mxu0 %v1865
    %v1936 = vpop.f32.mrb[0].mxu0
    %v1937 = vadd.f32 %v1863, %v1936
    %v1938 = vpop.f32.mrb[0].mxu0
    %1939 = vmatprep.mubr.f32.mxu0 0.0
    %1940 = vmatmul.mubr.f32.gmra.mrb[0].mxu0 %v1868
    %v1941 = vpop.f32.mrb[0].mxu0
    %v1942 = vadd.f32 %v1863, %v1941
    %v1943 = vpop.f32.mrb[0].mxu0
    %1944 = vdwg.mxu0
    %v1945 = vadd.f32 %v1937, %v1677
    %v1946 = vadd.f32 %v1942, %v1678
    %1947 = vst.msk [vmem:[#allocation10] sm:$0xff] %vm113, %v1945
    %1948 = vst.msk [vmem:[#allocation10 + $0x8] sm:$0xff] %vm113, %v1946
    // Predicated region
    $region34: #{tpu_custom_call.1} parent=1 // pred_check
      _
    $region35: #{tpu_custom_call.1} parent=1 // pred_check_branch
      %1950 = sbr.rel (0) target = $region37
    $region36: #{tpu_custom_call.1} parent=1 // pred_region
      %s1952 = ssub.s32 256, 256
      %1953 = vsyncadd [#allocation4], %s1952
      %s1954 = sshll.u32 [#allocation10], 4
      %s1955 = int_to_ptr.vmem [resolvable:$true] %s1954
      %1960 = dma.vmem_to_hbm [thread:$0]  %s1955, 256, %s4, [#allocation4], 128, 128, 8
    $region37: #{tpu_custom_call.1} parent=1 // pred_fallthru
      _
    // Predicated region
    $region38: #{tpu_custom_call.1} parent=1 // pred_check
      _
    $region39: #{tpu_custom_call.1} parent=1 // pred_check_branch
      %1962 = sbr.rel (0) target = $region41
    $region40: #{tpu_custom_call.1} parent=1 // pred_region
      %1963 = dma.done [#allocation4], 256
    $region41: #{tpu_custom_call.1} parent=1 // pred_fallthru
      _
    %1964 = vsyncpa [#allocation3], 1
    %1965 = vsyncpa [#allocation6], 1
    %1966 = vsyncpa [#allocation9], 1
    %1967 = vsyncpa [#allocation4], 1

</llo_original>
